<compile_context>
chip_gen: v5e
topology: v5e:2x2
jax: 0.10.0
libtpu: 0.0.40
codegen_flags: <defaults>
</compile_context>

<pallas_src>
import functools

import jax
import jax.numpy as jnp
from jax.experimental import pallas as pl
from jax.experimental.pallas import tpu as pltpu


EMB_DIM = 768                 # per-modality CLIP embedding dim
IN_FEATURES = 2 * EMB_DIM     # 1536
HIDDEN = 512
NUM_CLASSES = 4
PAD_CLASSES = 128             # lane-dense output; sliced back to 4 in wrapper


def clip_classifier_kernel(txt_ref, img_ref, w1t_ref, w1i_ref, b1_ref,
                           w2_ref, b2_ref, out_ref):
    # Cast activations f32 -> bf16 in-register (VPU filler under MXU slack);
    # embeddings travel HBM->VMEM as f32 exactly once, no wrapper-side cast.
    txt = txt_ref[...].astype(jnp.bfloat16)
    img = img_ref[...].astype(jnp.bfloat16)

    # Layer 1: Linear(1536, 512) as two accumulating matmuls over the two
    # halves of W1 -- mathematically identical to concat([txt, img], 1) @ W1,
    # but avoids materializing the concatenated [tm, 1536] tile in VMEM.
    h = jnp.dot(txt, w1t_ref[...], preferred_element_type=jnp.float32)
    h = h + jnp.dot(img, w1i_ref[...], preferred_element_type=jnp.float32)
    # Bias add + ReLU on the f32 accumulator (no bf16 VPU needed -> v5e-safe).
    h = jnp.maximum(h + b1_ref[...], 0.0)

    # Layer 2: Linear(512, 4) padded to 128 output lanes (unmasked stores).
    logits = jnp.dot(h.astype(jnp.bfloat16), w2_ref[...],
                     preferred_element_type=jnp.float32)
    out_ref[...] = (logits + b2_ref[...]).astype(out_ref.dtype)


def _round_up(x, m):
    return ((x + m - 1) // m) * m


def _choose_tm(B):
    if B <= 16:
        return B  # one block whose sublane dim equals the full array dim
    # >= 2 grid steps so both v7x TensorCores get batch work; 16-row
    # granularity (bf16 sublane pack); 512-row cap amortizes the ~0.35us
    # per-step overhead while keeping VMEM (~11 MiB at tm=512) well under
    # the default scoped limit on every generation.
    return min(512, _round_up(pl.cdiv(B, 2), 16))


def prepare_classifier_params(w1, b1, w2, b2):
    """One-time weight preprocessing; cache the result across forward calls.

    * W1 [1536, 512] is split into text/image halves and cast to bf16.
    * W2 [512, 4] / b2 are zero-padded out to 128 lane-dense columns.
    * b1 is reshaped to [1, 512] f32.
    """
    w1 = jnp.asarray(w1)
    w1t = w1[:EMB_DIM, :].astype(jnp.bfloat16)       # text half of W1
    w1i = w1[EMB_DIM:, :].astype(jnp.bfloat16)       # image half of W1
    b1r = jnp.asarray(b1, jnp.float32).reshape(1, HIDDEN)

    w2p = jnp.zeros((HIDDEN, PAD_CLASSES), jnp.bfloat16)
    w2p = w2p.at[:, :NUM_CLASSES].set(jnp.asarray(w2, jnp.bfloat16))
    b2p = jnp.zeros((1, PAD_CLASSES), jnp.float32)
    b2p = b2p.at[:, :NUM_CLASSES].set(
        jnp.asarray(b2, jnp.float32).reshape(1, NUM_CLASSES))
    return w1t, w1i, b1r, w2p, b2p


def clip_classifier_forward(text_emb, image_emb, prepared_params, *, tm=None):
    """Pallas wrapper: batch-gridded, weights resident across the grid.

    `prepared_params` comes from prepare_classifier_params() (cached)."""
    w1t, w1i, b1r, w2p, b2p = prepared_params
    B = text_emb.shape[0]
    if tm is None:
        tm = _choose_tm(B)

    # Ragged last block is fine: padding rows of the inputs are never read
    # into valid outputs (rows are independent) and OOB output rows are not
    # written back, so no jnp.pad copy of the embeddings is needed.
    grid = (pl.cdiv(B, tm),)

    out = pl.pallas_call(
        clip_classifier_kernel,
        out_shape=jax.ShapeDtypeStruct((B, PAD_CLASSES), jnp.bfloat16),
        grid=grid,
        in_specs=[
            pl.BlockSpec((tm, EMB_DIM), lambda i: (i, 0)),          # text emb (f32)
            pl.BlockSpec((tm, EMB_DIM), lambda i: (i, 0)),          # image emb (f32)
            pl.BlockSpec((EMB_DIM, HIDDEN), lambda i: (0, 0)),      # W1 text half, resident
            pl.BlockSpec((EMB_DIM, HIDDEN), lambda i: (0, 0)),      # W1 image half, resident
            pl.BlockSpec((1, HIDDEN), lambda i: (0, 0)),            # b1, resident
            pl.BlockSpec((HIDDEN, PAD_CLASSES), lambda i: (0, 0)),  # W2 (padded), resident
            pl.BlockSpec((1, PAD_CLASSES), lambda i: (0, 0)),       # b2 (padded), resident
        ],
        out_specs=pl.BlockSpec((tm, PAD_CLASSES), lambda i: (i, 0)),
        compiler_params=pltpu.CompilerParams(
            dimension_semantics=("parallel",)),  # batch tiles independent (2 TCs on v7x)
    )(text_emb, image_emb, w1t, w1i, b1r, w2p, b2p)

    return out[:, :NUM_CLASSES]


def init_params(key):
    """Deterministic init mirroring nn.Linear defaults:
    U(-1/sqrt(fan_in), 1/sqrt(fan_in)) for weights and biases. Weights are
    stored [in_features, out_features] (transpose of PyTorch's [out, in])."""
    k1, k2, k3, k4 = jax.random.split(key, 4)
    bound1 = 1.0 / jnp.sqrt(IN_FEATURES)
    bound2 = 1.0 / jnp.sqrt(HIDDEN)
    w1 = jax.random.uniform(k1, (IN_FEATURES, HIDDEN), jnp.float32,
                            -bound1, bound1)
    b1 = jax.random.uniform(k2, (1, HIDDEN), jnp.float32, -bound1, bound1)
    w2 = jax.random.uniform(k3, (HIDDEN, NUM_CLASSES), jnp.float32,
                            -bound2, bound2)
    b2 = jax.random.uniform(k4, (1, NUM_CLASSES), jnp.float32, -bound2, bound2)
    return w1, b1, w2, b2


def reference_forward(text_emb, image_emb, w1, b1, w2, b2):
    fused = jnp.concatenate([text_emb, image_emb], axis=1)
    h = jnp.maximum(fused @ w1 + b1, 0.0)
    return h @ w2 + b2


if __name__ == "__main__":
    key = jax.random.PRNGKey(0)
    kp, kt, ki = jax.random.split(key, 3)

    # Synthetic CLIP outputs: batch=8, per-modality embedding dim=768.
    B = 8
    text_embeds = jax.random.normal(kt, (B, EMB_DIM), jnp.float32)
    image_embeds = jax.random.normal(ki, (B, EMB_DIM), jnp.float32)

    w1, b1, w2, b2 = init_params(kp)

    # Weight preprocessing done ONCE; reuse `prepared` across forward calls.
    prepared = prepare_classifier_params(w1, b1, w2, b2)
    prepared = jax.block_until_ready(prepared)

    forward = jax.jit(clip_classifier_forward)
    logits = forward(text_embeds, image_embeds, prepared)
    logits = jax.block_until_ready(logits)

    # Correctness vs plain-JAX f32 reference (tolerance loosened for bf16
    # weights/activations/output; accumulation in the kernel is f32).
    expected = reference_forward(text_embeds, image_embeds, w1, b1, w2, b2)
    assert logits.shape == (B, NUM_CLASSES)
    assert jnp.allclose(logits.astype(jnp.float32), expected,
                        atol=2e-2, rtol=2e-2), (
        float(jnp.max(jnp.abs(logits.astype(jnp.float32) - expected))))

    print("KERNEL_OK")
</pallas_src>

<mosaic_0001>
module attributes {stable_mosaic.version = 11 : i64} {
  func.func @clip_classifier_kernel(%arg0: i32, %arg1: memref<8x768xf32, #tpu.memory_space<vmem>>, %arg2: memref<8x768xf32, #tpu.memory_space<vmem>>, %arg3: memref<768x512xbf16, #tpu.memory_space<vmem>>, %arg4: memref<768x512xbf16, #tpu.memory_space<vmem>>, %arg5: memref<1x512xf32, #tpu.memory_space<vmem>>, %arg6: memref<512x128xbf16, #tpu.memory_space<vmem>>, %arg7: memref<1x128xf32, #tpu.memory_space<vmem>>, %arg8: memref<8x128xbf16, #tpu.memory_space<vmem>>) attributes {dimension_semantics = [#tpu.dimension_semantics<parallel>], iteration_bounds = array<i64: 1>, scalar_prefetch = 0 : i64, scratch_operands = 0 : i64, tpu.core_type = #tpu.core_type<tc>, window_params = [{transform_indices = @transform_0, window_bounds = array<i64: 8, 768>}, {transform_indices = @transform_1, window_bounds = array<i64: 8, 768>}, {pipeline_mode = #tpu.pipeline_mode<synchronous>, transform_indices = @transform_2, window_bounds = array<i64: 768, 512>}, {pipeline_mode = #tpu.pipeline_mode<synchronous>, transform_indices = @transform_3, window_bounds = array<i64: 768, 512>}, {pipeline_mode = #tpu.pipeline_mode<synchronous>, transform_indices = @transform_4, window_bounds = array<i64: 1, 512>}, {pipeline_mode = #tpu.pipeline_mode<synchronous>, transform_indices = @transform_5, window_bounds = array<i64: 512, 128>}, {pipeline_mode = #tpu.pipeline_mode<synchronous>, transform_indices = @transform_6, window_bounds = array<i64: 1, 128>}, {transform_indices = @transform_7, window_bounds = array<i64: 8, 128>}]} {
    %c0 = arith.constant 0 : index
    %c0_0 = arith.constant 0 : index
    %0 = vector.load %arg1[%c0, %c0_0] : memref<8x768xf32, #tpu.memory_space<vmem>>, vector<8x768xf32>
    %1 = arith.truncf %0 : vector<8x768xf32> to vector<8x768xbf16>
    %c0_1 = arith.constant 0 : index
    %c0_2 = arith.constant 0 : index
    %2 = vector.load %arg2[%c0_1, %c0_2] : memref<8x768xf32, #tpu.memory_space<vmem>>, vector<8x768xf32>
    %3 = arith.truncf %2 : vector<8x768xf32> to vector<8x768xbf16>
    %c0_3 = arith.constant 0 : index
    %c0_4 = arith.constant 0 : index
    %4 = vector.load %arg3[%c0_3, %c0_4] : memref<768x512xbf16, #tpu.memory_space<vmem>>, vector<768x512xbf16>
    %cst = arith.constant dense<0.000000e+00> : vector<8x512xf32>
    %5 = tpu.matmul %1, %4, %cst {dimension_numbers = #tpu.dot_dimension_numbers<[1], [0], [0], [1], [0, 0, 1, 1], [], []>} : vector<8x768xbf16>, vector<768x512xbf16>, vector<8x512xf32> -> vector<8x512xf32>
    %c0_5 = arith.constant 0 : index
    %c0_6 = arith.constant 0 : index
    %6 = vector.load %arg4[%c0_5, %c0_6] : memref<768x512xbf16, #tpu.memory_space<vmem>>, vector<768x512xbf16>
    %cst_7 = arith.constant dense<0.000000e+00> : vector<8x512xf32>
    %7 = tpu.matmul %3, %6, %cst_7 {dimension_numbers = #tpu.dot_dimension_numbers<[1], [0], [0], [1], [0, 0, 1, 1], [], []>} : vector<8x768xbf16>, vector<768x512xbf16>, vector<8x512xf32> -> vector<8x512xf32>
    %8 = arith.addf %5, %7 : vector<8x512xf32>
    %c0_8 = arith.constant 0 : index
    %c0_9 = arith.constant 0 : index
    %9 = vector.load %arg5[%c0_8, %c0_9] : memref<1x512xf32, #tpu.memory_space<vmem>>, vector<1x512xf32>
    %10 = vector.broadcast %9 : vector<1x512xf32> to vector<8x512xf32>
    %11 = arith.addf %8, %10 : vector<8x512xf32>
    %cst_10 = arith.constant 0.000000e+00 : f32
    %12 = vector.broadcast %cst_10 : f32 to vector<8x512xf32>
    %13 = arith.maximumf %11, %12 : vector<8x512xf32>
    %14 = arith.truncf %13 : vector<8x512xf32> to vector<8x512xbf16>
    %c0_11 = arith.constant 0 : index
    %c0_12 = arith.constant 0 : index
    %15 = vector.load %arg6[%c0_11, %c0_12] : memref<512x128xbf16, #tpu.memory_space<vmem>>, vector<512x128xbf16>
    %cst_13 = arith.constant dense<0.000000e+00> : vector<8x128xf32>
    %16 = tpu.matmul %14, %15, %cst_13 {dimension_numbers = #tpu.dot_dimension_numbers<[1], [0], [0], [1], [0, 0, 1, 1], [], []>} : vector<8x512xbf16>, vector<512x128xbf16>, vector<8x128xf32> -> vector<8x128xf32>
    %c0_14 = arith.constant 0 : index
    %c0_15 = arith.constant 0 : index
    %17 = vector.load %arg7[%c0_14, %c0_15] : memref<1x128xf32, #tpu.memory_space<vmem>>, vector<1x128xf32>
    %18 = vector.broadcast %17 : vector<1x128xf32> to vector<8x128xf32>
    %19 = arith.addf %16, %18 : vector<8x128xf32>
    %20 = arith.truncf %19 : vector<8x128xf32> to vector<8x128xbf16>
    %c0_16 = arith.constant 0 : index
    %c0_17 = arith.constant 0 : index
    %21 = vector.load %arg8[%c0_16, %c0_17] : memref<8x128xbf16, #tpu.memory_space<vmem>>, vector<8x128xbf16>
    tpu.vector_store %arg8[%c0_16, %c0_17], %20 {strides = array<i32>} : memref<8x128xbf16, #tpu.memory_space<vmem>>, vector<8x128xbf16>,
    return
  }
  func.func @transform_0(%arg0: i32) -> (i32, i32) {
    %c0_i32 = arith.constant 0 : i32
    %c0_i32_0 = arith.constant 0 : i32
    return %arg0, %c0_i32 : i32, i32
  }
  func.func @transform_1(%arg0: i32) -> (i32, i32) {
    %c0_i32 = arith.constant 0 : i32
    %c0_i32_0 = arith.constant 0 : i32
    return %arg0, %c0_i32 : i32, i32
  }
  func.func @transform_2(%arg0: i32) -> (i32, i32) {
    %c0_i32 = arith.constant 0 : i32
    %c0_i32_0 = arith.constant 0 : i32
    %c0_i32_1 = arith.constant 0 : i32
    return %c0_i32, %c0_i32_0 : i32, i32
  }
  func.func @transform_3(%arg0: i32) -> (i32, i32) {
    %c0_i32 = arith.constant 0 : i32
    %c0_i32_0 = arith.constant 0 : i32
    %c0_i32_1 = arith.constant 0 : i32
    return %c0_i32, %c0_i32_0 : i32, i32
  }
  func.func @transform_4(%arg0: i32) -> (i32, i32) {
    %c0_i32 = arith.constant 0 : i32
    %c0_i32_0 = arith.constant 0 : i32
    %c0_i32_1 = arith.constant 0 : i32
    return %c0_i32, %c0_i32_0 : i32, i32
  }
  func.func @transform_5(%arg0: i32) -> (i32, i32) {
    %c0_i32 = arith.constant 0 : i32
    %c0_i32_0 = arith.constant 0 : i32
    %c0_i32_1 = arith.constant 0 : i32
    return %c0_i32, %c0_i32_0 : i32, i32
  }
  func.func @transform_6(%arg0: i32) -> (i32, i32) {
    %c0_i32 = arith.constant 0 : i32
    %c0_i32_0 = arith.constant 0 : i32
    %c0_i32_1 = arith.constant 0 : i32
    return %c0_i32, %c0_i32_0 : i32, i32
  }
  func.func @transform_7(%arg0: i32) -> (i32, i32) {
    %c0_i32 = arith.constant 0 : i32
    %c0_i32_0 = arith.constant 0 : i32
    return %arg0, %c0_i32 : i32, i32
  }
}

</mosaic_0001>

<llo_original>
// kernel: clip_classifier_forward.1
$region0: #{clip_classifier_forward.1}
  #allocation0 [shape = 'u32[]', space=smem, size = 0x4, offset = 0x4, fixed_abs, tag = 'smem constant byte address 0x4 - core index']
  #allocation1 [shape = 'u32[72,128]{1,0:T(1,128)}', space=vmem, size = 0x9000, scoped, tag = 'internal scratch']
  %s0 = inlined_call_operand.hbm [shape: f32[8,768], index: 0, kind: input, shape index: {}]
  %s1 = inlined_call_operand.hbm [shape: f32[8,768], index: 1, kind: input, shape index: {}]
  %s2 = inlined_call_operand.hbm [shape: bf16[768,512], index: 2, kind: input, shape index: {}]
  %s3 = inlined_call_operand.hbm [shape: bf16[768,512], index: 3, kind: input, shape index: {}]
  %s4 = inlined_call_operand.hbm [shape: f32[1,512], index: 4, kind: input, shape index: {}]
  %s5 = inlined_call_operand.hbm [shape: bf16[512,128], index: 5, kind: input, shape index: {}]
  %s6 = inlined_call_operand.vmem [shape: f32[1,128], index: 6, kind: input, shape index: {}]
  %s7 = inlined_call_operand.vmem [shape: bf16[8,128], index: 7, kind: output, shape index: {}]
  %s8 = sld [smem:[#allocation0]]
  $region62: #{clip_classifier_forward.1} parent=0
    _
  %s10 = ssub.s32 1, %s8
  %s11 = scalar_select 0, %s10, %s8
  $region1: #{clip_classifier_forward.1} parent=0
    #allocation2 [shape = 'u8[24576]{0}', space=vmem, size = 0x6000, scoped, tag = 'input window, operand 0, single buffered']
    #allocation3 [shape = 's32[1]{0}', space=sflag, size = 0x4, scoped, tag = 'scoped memory for clip_classifier_forward.1']
    #allocation4 [shape = 'u8[24576]{0}', space=vmem, size = 0x6000, scoped, tag = 'input window, operand 1, single buffered']
    #allocation5 [shape = 's32[1]{0}', space=sflag, size = 0x4, scoped, tag = 'scoped memory for clip_classifier_forward.1']
    #allocation6 [shape = 'u8[786432]{0}', space=vmem, size = 0xc0000, scoped, tag = 'input window, operand 2, single buffered']
    #allocation7 [shape = 'u8[786432]{0}', space=vmem, size = 0xc0000, scoped, tag = 'input window, operand 3, single buffered']
    #allocation8 [shape = 's32[1]{0}', space=sflag, size = 0x4, scoped, tag = 'scoped memory for clip_classifier_forward.1']
    #allocation9 [shape = 'u8[2048]{0}', space=vmem, size = 0x800, scoped, tag = 'input window, operand 4, single buffered']
    #allocation10 [shape = 'u8[131072]{0}', space=vmem, size = 0x20000, scoped, tag = 'input window, operand 5, single buffered']
    #allocation11 [shape = 's32[1]{0}', space=sflag, size = 0x4, scoped, tag = 'scoped memory for clip_classifier_forward.1']
    %12 = vsyncpa [#allocation3], 0
    %13 = vsyncpa [#allocation5], 0
    %14 = vsyncpa [#allocation8], 0
    %15 = vsyncpa [#allocation11], 0
    // Predicated region
    $region2: #{clip_classifier_forward.1} parent=1 // pred_check
      _
    $region3: #{clip_classifier_forward.1} parent=1 // pred_check_branch
      %17 = sbr.rel (0) target = $region5
    $region4: #{clip_classifier_forward.1} parent=1 // pred_region
      %19 = vsyncadd [#allocation3], 0
      %s21 = sshll.u32 %s0, 4
      %s22 = int_to_ptr.hbm [resolvable:$true] %s21
      %s23 = sshll.u32 [#allocation2], 4
      %s24 = int_to_ptr.vmem [resolvable:$true] %s23
      %26 = dma.hbm_to_vmem [thread:$0]  %s22, 768, %s24, [#allocation3]
    $region5: #{clip_classifier_forward.1} parent=1 // pred_fallthru
      _
    // Predicated region
    $region6: #{clip_classifier_forward.1} parent=1 // pred_check
      _
    $region7: #{clip_classifier_forward.1} parent=1 // pred_check_branch
      %28 = sbr.rel (0) target = $region9
    $region8: #{clip_classifier_forward.1} parent=1 // pred_region
      %30 = vsyncadd [#allocation5], 0
      %s32 = sshll.u32 %s1, 4
      %s33 = int_to_ptr.hbm [resolvable:$true] %s32
      %s34 = sshll.u32 [#allocation4], 4
      %s35 = int_to_ptr.vmem [resolvable:$true] %s34
      %37 = dma.hbm_to_vmem [thread:$0]  %s33, 768, %s35, [#allocation5]
    $region9: #{clip_classifier_forward.1} parent=1 // pred_fallthru
      _
    // Predicated region
    $region10: #{clip_classifier_forward.1} parent=1 // pred_check
      _
    $region11: #{clip_classifier_forward.1} parent=1 // pred_check_branch
      %39 = sbr.rel (0) target = $region13
    $region12: #{clip_classifier_forward.1} parent=1 // pred_region
      %41 = vsyncadd [#allocation5], 0
      %s42 = sshll.u32 %s2, 4
      %s43 = int_to_ptr.hbm [resolvable:$true] %s42
      %s44 = sshll.u32 [#allocation6], 4
      %s45 = int_to_ptr.vmem [resolvable:$true] %s44
      %50 = dma.hbm_to_vmem [thread:$0]  %s43, 24576, %s45, [#allocation5], 256, 256, 16
    $region13: #{clip_classifier_forward.1} parent=1 // pred_fallthru
      _
    // Predicated region
    $region14: #{clip_classifier_forward.1} parent=1 // pred_check
      _
    $region15: #{clip_classifier_forward.1} parent=1 // pred_check_branch
      %52 = sbr.rel (0) target = $region17
    $region16: #{clip_classifier_forward.1} parent=1 // pred_region
      %54 = vsyncadd [#allocation8], 0
      %s55 = sshll.u32 %s3, 4
      %s56 = int_to_ptr.hbm [resolvable:$true] %s55
      %s57 = sshll.u32 [#allocation7], 4
      %s58 = int_to_ptr.vmem [resolvable:$true] %s57
      %63 = dma.hbm_to_vmem [thread:$0]  %s56, 24576, %s58, [#allocation8], 256, 256, 16
    $region17: #{clip_classifier_forward.1} parent=1 // pred_fallthru
      _
    // Predicated region
    $region18: #{clip_classifier_forward.1} parent=1 // pred_check
      _
    $region19: #{clip_classifier_forward.1} parent=1 // pred_check_branch
      %65 = sbr.rel (0) target = $region21
    $region20: #{clip_classifier_forward.1} parent=1 // pred_region
      %67 = vsyncadd [#allocation8], 0
      %s69 = sshll.u32 %s4, 4
      %s70 = int_to_ptr.hbm [resolvable:$true] %s69
      %s71 = sshll.u32 [#allocation9], 4
      %s72 = int_to_ptr.vmem [resolvable:$true] %s71
      %74 = dma.hbm_to_vmem [thread:$0]  %s70, 64, %s72, [#allocation8]
    $region21: #{clip_classifier_forward.1} parent=1 // pred_fallthru
      _
    // Predicated region
    $region22: #{clip_classifier_forward.1} parent=1 // pred_check
      _
    $region23: #{clip_classifier_forward.1} parent=1 // pred_check_branch
      %76 = sbr.rel (0) target = $region25
    $region24: #{clip_classifier_forward.1} parent=1 // pred_region
      %78 = vsyncadd [#allocation11], 0
      %s79 = sshll.u32 %s5, 4
      %s80 = int_to_ptr.hbm [resolvable:$true] %s79
      %s81 = sshll.u32 [#allocation10], 4
      %s82 = int_to_ptr.vmem [resolvable:$true] %s81
      %87 = dma.hbm_to_vmem [thread:$0]  %s80, 4096, %s82, [#allocation11], 64, 64, 4
    $region25: #{clip_classifier_forward.1} parent=1 // pred_fallthru
      _
    // Predicated region
    $region26: #{clip_classifier_forward.1} parent=1 // pred_check
      _
    $region27: #{clip_classifier_forward.1} parent=1 // pred_check_branch
      %89 = sbr.rel (0) target = $region29
    $region28: #{clip_classifier_forward.1} parent=1 // pred_region
      _
    $region29: #{clip_classifier_forward.1} parent=1 // pred_fallthru
      _
    // Predicated region
    $region30: #{clip_classifier_forward.1} parent=1 // pred_check
      _
    $region31: #{clip_classifier_forward.1} parent=1 // pred_check_branch
      %91 = sbr.rel (0) target = $region33
    $region32: #{clip_classifier_forward.1} parent=1 // pred_region
      %93 = dma.done [#allocation3], 768
    $region33: #{clip_classifier_forward.1} parent=1 // pred_fallthru
      _
    // Predicated region
    $region34: #{clip_classifier_forward.1} parent=1 // pred_check
      _
    $region35: #{clip_classifier_forward.1} parent=1 // pred_check_branch
      %95 = sbr.rel (0) target = $region37
    $region36: #{clip_classifier_forward.1} parent=1 // pred_region
      %97 = dma.done [#allocation5], 768
    $region37: #{clip_classifier_forward.1} parent=1 // pred_fallthru
      _
    // Predicated region
    $region38: #{clip_classifier_forward.1} parent=1 // pred_check
      _
    $region39: #{clip_classifier_forward.1} parent=1 // pred_check_branch
      %99 = sbr.rel (0) target = $region41
    $region40: #{clip_classifier_forward.1} parent=1 // pred_region
      %101 = dma.done [#allocation5], 24576
    $region41: #{clip_classifier_forward.1} parent=1 // pred_fallthru
      _
    // Predicated region
    $region42: #{clip_classifier_forward.1} parent=1 // pred_check
      _
    $region43: #{clip_classifier_forward.1} parent=1 // pred_check_branch
      %103 = sbr.rel (0) target = $region45
    $region44: #{clip_classifier_forward.1} parent=1 // pred_region
      %105 = dma.done [#allocation8], 24576
    $region45: #{clip_classifier_forward.1} parent=1 // pred_fallthru
      _
    // Predicated region
    $region46: #{clip_classifier_forward.1} parent=1 // pred_check
      _
    $region47: #{clip_classifier_forward.1} parent=1 // pred_check_branch
      %107 = sbr.rel (0) target = $region49
    $region48: #{clip_classifier_forward.1} parent=1 // pred_region
      %109 = dma.done [#allocation8], 64
    $region49: #{clip_classifier_forward.1} parent=1 // pred_fallthru
      _
    // Predicated region
    $region50: #{clip_classifier_forward.1} parent=1 // pred_check
      _
    $region51: #{clip_classifier_forward.1} parent=1 // pred_check_branch
      %111 = sbr.rel (0) target = $region53
    $region52: #{clip_classifier_forward.1} parent=1 // pred_region
      %113 = dma.done [#allocation11], 4096
    $region53: #{clip_classifier_forward.1} parent=1 // pred_fallthru
      _
    %v114 = vld [vmem:[#allocation2] sm:$0xff]
    %v115 = vld [vmem:[#allocation2 + $0x8] sm:$0xff]
    %v116 = vld [vmem:[#allocation2 + $0x10] sm:$0xff]
    %v117 = vld [vmem:[#allocation2 + $0x18] sm:$0xff]
    %v118 = vld [vmem:[#allocation2 + $0x20] sm:$0xff]
    %v119 = vld [vmem:[#allocation2 + $0x28] sm:$0xff]
    %v120 = vpack.c.bf16 %v114, %v114
    %v121 = vpack.c.bf16 %v115, %v115
    %v122 = vpack.c.bf16 %v116, %v116
    %v123 = vpack.c.bf16 %v117, %v117
    %v124 = vpack.c.bf16 %v118, %v118
    %v125 = vpack.c.bf16 %v119, %v119
    %v126 = vld [vmem:[#allocation4] sm:$0xff]
    %v127 = vld [vmem:[#allocation4 + $0x8] sm:$0xff]
    %v128 = vld [vmem:[#allocation4 + $0x10] sm:$0xff]
    %v129 = vld [vmem:[#allocation4 + $0x18] sm:$0xff]
    %v130 = vld [vmem:[#allocation4 + $0x20] sm:$0xff]
    %v131 = vld [vmem:[#allocation4 + $0x28] sm:$0xff]
    %v132 = vpack.c.bf16 %v126, %v126
    %v133 = vpack.c.bf16 %v127, %v127
    %v134 = vpack.c.bf16 %v128, %v128
    %v135 = vpack.c.bf16 %v129, %v129
    %v136 = vpack.c.bf16 %v130, %v130
    %v137 = vpack.c.bf16 %v131, %v131
    %v138 = vld [vmem:[#allocation6] sm:$0xff]
    %v139 = vld [vmem:[#allocation6 + $0x8] sm:$0xff]
    %v140 = vld [vmem:[#allocation6 + $0x10] sm:$0xff]
    %v141 = vld [vmem:[#allocation6 + $0x18] sm:$0xff]
    %v142 = vld [vmem:[#allocation6 + $0x20] sm:$0xff]
    %v143 = vld [vmem:[#allocation6 + $0x28] sm:$0xff]
    %v144 = vld [vmem:[#allocation6 + $0x30] sm:$0xff]
    %v145 = vld [vmem:[#allocation6 + $0x38] sm:$0xff]
    %v146 = vld [vmem:[#allocation6 + $0x40] sm:$0xff]
    %v147 = vld [vmem:[#allocation6 + $0x48] sm:$0xff]
    %v148 = vld [vmem:[#allocation6 + $0x50] sm:$0xff]
    %v149 = vld [vmem:[#allocation6 + $0x58] sm:$0xff]
    %v150 = vld [vmem:[#allocation6 + $0x60] sm:$0xff]
    %v151 = vld [vmem:[#allocation6 + $0x68] sm:$0xff]
    %v152 = vld [vmem:[#allocation6 + $0x70] sm:$0xff]
    %v153 = vld [vmem:[#allocation6 + $0x78] sm:$0xff]
    %v154 = vld [vmem:[#allocation6 + $0x80] sm:$0xff]
    %v155 = vld [vmem:[#allocation6 + $0x88] sm:$0xff]
    %v156 = vld [vmem:[#allocation6 + $0x90] sm:$0xff]
    %v157 = vld [vmem:[#allocation6 + $0x98] sm:$0xff]
    %v158 = vld [vmem:[#allocation6 + $0xa0] sm:$0xff]
    %v159 = vld [vmem:[#allocation6 + $0xa8] sm:$0xff]
    %v160 = vld [vmem:[#allocation6 + $0xb0] sm:$0xff]
    %v161 = vld [vmem:[#allocation6 + $0xb8] sm:$0xff]
    %v162 = vld [vmem:[#allocation6 + $0xc0] sm:$0xff]
    %v163 = vld [vmem:[#allocation6 + $0xc8] sm:$0xff]
    %v164 = vld [vmem:[#allocation6 + $0xd0] sm:$0xff]
    %v165 = vld [vmem:[#allocation6 + $0xd8] sm:$0xff]
    %v166 = vld [vmem:[#allocation6 + $0xe0] sm:$0xff]
    %v167 = vld [vmem:[#allocation6 + $0xe8] sm:$0xff]
    %v168 = vld [vmem:[#allocation6 + $0xf0] sm:$0xff]
    %v169 = vld [vmem:[#allocation6 + $0xf8] sm:$0xff]
    %v170 = vld [vmem:[#allocation6 + $0x100] sm:$0xff]
    %v171 = vld [vmem:[#allocation6 + $0x108] sm:$0xff]
    %v172 = vld [vmem:[#allocation6 + $0x110] sm:$0xff]
    %v173 = vld [vmem:[#allocation6 + $0x118] sm:$0xff]
    %v174 = vld [vmem:[#allocation6 + $0x120] sm:$0xff]
    %v175 = vld [vmem:[#allocation6 + $0x128] sm:$0xff]
    %v176 = vld [vmem:[#allocation6 + $0x130] sm:$0xff]
    %v177 = vld [vmem:[#allocation6 + $0x138] sm:$0xff]
    %v178 = vld [vmem:[#allocation6 + $0x140] sm:$0xff]
    %v179 = vld [vmem:[#allocation6 + $0x148] sm:$0xff]
    %v180 = vld [vmem:[#allocation6 + $0x150] sm:$0xff]
    %v181 = vld [vmem:[#allocation6 + $0x158] sm:$0xff]
    %v182 = vld [vmem:[#allocation6 + $0x160] sm:$0xff]
    %v183 = vld [vmem:[#allocation6 + $0x168] sm:$0xff]
    %v184 = vld [vmem:[#allocation6 + $0x170] sm:$0xff]
    %v185 = vld [vmem:[#allocation6 + $0x178] sm:$0xff]
    %v186 = vld [vmem:[#allocation6 + $0x180] sm:$0xff]
    %v187 = vld [vmem:[#allocation6 + $0x188] sm:$0xff]
    %v188 = vld [vmem:[#allocation6 + $0x190] sm:$0xff]
    %v189 = vld [vmem:[#allocation6 + $0x198] sm:$0xff]
    %v190 = vld [vmem:[#allocation6 + $0x1a0] sm:$0xff]
    %v191 = vld [vmem:[#allocation6 + $0x1a8] sm:$0xff]
    %v192 = vld [vmem:[#allocation6 + $0x1b0] sm:$0xff]
    %v193 = vld [vmem:[#allocation6 + $0x1b8] sm:$0xff]
    %v194 = vld [vmem:[#allocation6 + $0x1c0] sm:$0xff]
    %v195 = vld [vmem:[#allocation6 + $0x1c8] sm:$0xff]
    %v196 = vld [vmem:[#allocation6 + $0x1d0] sm:$0xff]
    %v197 = vld [vmem:[#allocation6 + $0x1d8] sm:$0xff]
    %v198 = vld [vmem:[#allocation6 + $0x1e0] sm:$0xff]
    %v199 = vld [vmem:[#allocation6 + $0x1e8] sm:$0xff]
    %v200 = vld [vmem:[#allocation6 + $0x1f0] sm:$0xff]
    %v201 = vld [vmem:[#allocation6 + $0x1f8] sm:$0xff]
    %v202 = vld [vmem:[#allocation6 + $0x200] sm:$0xff]
    %v203 = vld [vmem:[#allocation6 + $0x208] sm:$0xff]
    %v204 = vld [vmem:[#allocation6 + $0x210] sm:$0xff]
    %v205 = vld [vmem:[#allocation6 + $0x218] sm:$0xff]
    %v206 = vld [vmem:[#allocation6 + $0x220] sm:$0xff]
    %v207 = vld [vmem:[#allocation6 + $0x228] sm:$0xff]
    %v208 = vld [vmem:[#allocation6 + $0x230] sm:$0xff]
    %v209 = vld [vmem:[#allocation6 + $0x238] sm:$0xff]
    %v210 = vld [vmem:[#allocation6 + $0x240] sm:$0xff]
    %v211 = vld [vmem:[#allocation6 + $0x248] sm:$0xff]
    %v212 = vld [vmem:[#allocation6 + $0x250] sm:$0xff]
    %v213 = vld [vmem:[#allocation6 + $0x258] sm:$0xff]
    %v214 = vld [vmem:[#allocation6 + $0x260] sm:$0xff]
    %v215 = vld [vmem:[#allocation6 + $0x268] sm:$0xff]
    %v216 = vld [vmem:[#allocation6 + $0x270] sm:$0xff]
    %v217 = vld [vmem:[#allocation6 + $0x278] sm:$0xff]
    %v218 = vld [vmem:[#allocation6 + $0x280] sm:$0xff]
    %v219 = vld [vmem:[#allocation6 + $0x288] sm:$0xff]
    %v220 = vld [vmem:[#allocation6 + $0x290] sm:$0xff]
    %v221 = vld [vmem:[#allocation6 + $0x298] sm:$0xff]
    %v222 = vld [vmem:[#allocation6 + $0x2a0] sm:$0xff]
    %v223 = vld [vmem:[#allocation6 + $0x2a8] sm:$0xff]
    %v224 = vld [vmem:[#allocation6 + $0x2b0] sm:$0xff]
    %v225 = vld [vmem:[#allocation6 + $0x2b8] sm:$0xff]
    %v226 = vld [vmem:[#allocation6 + $0x2c0] sm:$0xff]
    %v227 = vld [vmem:[#allocation6 + $0x2c8] sm:$0xff]
    %v228 = vld [vmem:[#allocation6 + $0x2d0] sm:$0xff]
    %v229 = vld [vmem:[#allocation6 + $0x2d8] sm:$0xff]
    %v230 = vld [vmem:[#allocation6 + $0x2e0] sm:$0xff]
    %v231 = vld [vmem:[#allocation6 + $0x2e8] sm:$0xff]
    %v232 = vld [vmem:[#allocation6 + $0x2f0] sm:$0xff]
    %v233 = vld [vmem:[#allocation6 + $0x2f8] sm:$0xff]
    %v234 = vld [vmem:[#allocation6 + $0x300] sm:$0xff]
    %v235 = vld [vmem:[#allocation6 + $0x308] sm:$0xff]
    %v236 = vld [vmem:[#allocation6 + $0x310] sm:$0xff]
    %v237 = vld [vmem:[#allocation6 + $0x318] sm:$0xff]
    %v238 = vld [vmem:[#allocation6 + $0x320] sm:$0xff]
    %v239 = vld [vmem:[#allocation6 + $0x328] sm:$0xff]
    %v240 = vld [vmem:[#allocation6 + $0x330] sm:$0xff]
    %v241 = vld [vmem:[#allocation6 + $0x338] sm:$0xff]
    %v242 = vld [vmem:[#allocation6 + $0x340] sm:$0xff]
    %v243 = vld [vmem:[#allocation6 + $0x348] sm:$0xff]
    %v244 = vld [vmem:[#allocation6 + $0x350] sm:$0xff]
    %v245 = vld [vmem:[#allocation6 + $0x358] sm:$0xff]
    %v246 = vld [vmem:[#allocation6 + $0x360] sm:$0xff]
    %v247 = vld [vmem:[#allocation6 + $0x368] sm:$0xff]
    %v248 = vld [vmem:[#allocation6 + $0x370] sm:$0xff]
    %v249 = vld [vmem:[#allocation6 + $0x378] sm:$0xff]
    %v250 = vld [vmem:[#allocation6 + $0x380] sm:$0xff]
    %v251 = vld [vmem:[#allocation6 + $0x388] sm:$0xff]
    %v252 = vld [vmem:[#allocation6 + $0x390] sm:$0xff]
    %v253 = vld [vmem:[#allocation6 + $0x398] sm:$0xff]
    %v254 = vld [vmem:[#allocation6 + $0x3a0] sm:$0xff]
    %v255 = vld [vmem:[#allocation6 + $0x3a8] sm:$0xff]
    %v256 = vld [vmem:[#allocation6 + $0x3b0] sm:$0xff]
    %v257 = vld [vmem:[#allocation6 + $0x3b8] sm:$0xff]
    %v258 = vld [vmem:[#allocation6 + $0x3c0] sm:$0xff]
    %v259 = vld [vmem:[#allocation6 + $0x3c8] sm:$0xff]
    %v260 = vld [vmem:[#allocation6 + $0x3d0] sm:$0xff]
    %v261 = vld [vmem:[#allocation6 + $0x3d8] sm:$0xff]
    %v262 = vld [vmem:[#allocation6 + $0x3e0] sm:$0xff]
    %v263 = vld [vmem:[#allocation6 + $0x3e8] sm:$0xff]
    %v264 = vld [vmem:[#allocation6 + $0x3f0] sm:$0xff]
    %v265 = vld [vmem:[#allocation6 + $0x3f8] sm:$0xff]
    %v266 = vld [vmem:[#allocation6 + $0x400] sm:$0xff]
    %v267 = vld [vmem:[#allocation6 + $0x408] sm:$0xff]
    %v268 = vld [vmem:[#allocation6 + $0x410] sm:$0xff]
    %v269 = vld [vmem:[#allocation6 + $0x418] sm:$0xff]
    %v270 = vld [vmem:[#allocation6 + $0x420] sm:$0xff]
    %v271 = vld [vmem:[#allocation6 + $0x428] sm:$0xff]
    %v272 = vld [vmem:[#allocation6 + $0x430] sm:$0xff]
    %v273 = vld [vmem:[#allocation6 + $0x438] sm:$0xff]
    %v274 = vld [vmem:[#allocation6 + $0x440] sm:$0xff]
    %v275 = vld [vmem:[#allocation6 + $0x448] sm:$0xff]
    %v276 = vld [vmem:[#allocation6 + $0x450] sm:$0xff]
    %v277 = vld [vmem:[#allocation6 + $0x458] sm:$0xff]
    %v278 = vld [vmem:[#allocation6 + $0x460] sm:$0xff]
    %v279 = vld [vmem:[#allocation6 + $0x468] sm:$0xff]
    %v280 = vld [vmem:[#allocation6 + $0x470] sm:$0xff]
    %v281 = vld [vmem:[#allocation6 + $0x478] sm:$0xff]
    %v282 = vld [vmem:[#allocation6 + $0x480] sm:$0xff]
    %v283 = vld [vmem:[#allocation6 + $0x488] sm:$0xff]
    %v284 = vld [vmem:[#allocation6 + $0x490] sm:$0xff]
    %v285 = vld [vmem:[#allocation6 + $0x498] sm:$0xff]
    %v286 = vld [vmem:[#allocation6 + $0x4a0] sm:$0xff]
    %v287 = vld [vmem:[#allocation6 + $0x4a8] sm:$0xff]
    %v288 = vld [vmem:[#allocation6 + $0x4b0] sm:$0xff]
    %v289 = vld [vmem:[#allocation6 + $0x4b8] sm:$0xff]
    %v290 = vld [vmem:[#allocation6 + $0x4c0] sm:$0xff]
    %v291 = vld [vmem:[#allocation6 + $0x4c8] sm:$0xff]
    %v292 = vld [vmem:[#allocation6 + $0x4d0] sm:$0xff]
    %v293 = vld [vmem:[#allocation6 + $0x4d8] sm:$0xff]
    %v294 = vld [vmem:[#allocation6 + $0x4e0] sm:$0xff]
    %v295 = vld [vmem:[#allocation6 + $0x4e8] sm:$0xff]
    %v296 = vld [vmem:[#allocation6 + $0x4f0] sm:$0xff]
    %v297 = vld [vmem:[#allocation6 + $0x4f8] sm:$0xff]
    %v298 = vld [vmem:[#allocation6 + $0x500] sm:$0xff]
    %v299 = vld [vmem:[#allocation6 + $0x508] sm:$0xff]
    %v300 = vld [vmem:[#allocation6 + $0x510] sm:$0xff]
    %v301 = vld [vmem:[#allocation6 + $0x518] sm:$0xff]
    %v302 = vld [vmem:[#allocation6 + $0x520] sm:$0xff]
    %v303 = vld [vmem:[#allocation6 + $0x528] sm:$0xff]
    %v304 = vld [vmem:[#allocation6 + $0x530] sm:$0xff]
    %v305 = vld [vmem:[#allocation6 + $0x538] sm:$0xff]
    %v306 = vld [vmem:[#allocation6 + $0x540] sm:$0xff]
    %v307 = vld [vmem:[#allocation6 + $0x548] sm:$0xff]
    %v308 = vld [vmem:[#allocation6 + $0x550] sm:$0xff]
    %v309 = vld [vmem:[#allocation6 + $0x558] sm:$0xff]
    %v310 = vld [vmem:[#allocation6 + $0x560] sm:$0xff]
    %v311 = vld [vmem:[#allocation6 + $0x568] sm:$0xff]
    %v312 = vld [vmem:[#allocation6 + $0x570] sm:$0xff]
    %v313 = vld [vmem:[#allocation6 + $0x578] sm:$0xff]
    %v314 = vld [vmem:[#allocation6 + $0x580] sm:$0xff]
    %v315 = vld [vmem:[#allocation6 + $0x588] sm:$0xff]
    %v316 = vld [vmem:[#allocation6 + $0x590] sm:$0xff]
    %v317 = vld [vmem:[#allocation6 + $0x598] sm:$0xff]
    %v318 = vld [vmem:[#allocation6 + $0x5a0] sm:$0xff]
    %v319 = vld [vmem:[#allocation6 + $0x5a8] sm:$0xff]
    %v320 = vld [vmem:[#allocation6 + $0x5b0] sm:$0xff]
    %v321 = vld [vmem:[#allocation6 + $0x5b8] sm:$0xff]
    %v322 = vld [vmem:[#allocation6 + $0x5c0] sm:$0xff]
    %v323 = vld [vmem:[#allocation6 + $0x5c8] sm:$0xff]
    %v324 = vld [vmem:[#allocation6 + $0x5d0] sm:$0xff]
    %v325 = vld [vmem:[#allocation6 + $0x5d8] sm:$0xff]
    %v326 = vld [vmem:[#allocation6 + $0x5e0] sm:$0xff]
    %v327 = vld [vmem:[#allocation6 + $0x5e8] sm:$0xff]
    %v328 = vld [vmem:[#allocation6 + $0x5f0] sm:$0xff]
    %v329 = vld [vmem:[#allocation6 + $0x5f8] sm:$0xff]
    %v330 = vld [vmem:[#allocation7] sm:$0xff]
    %v331 = vld [vmem:[#allocation7 + $0x8] sm:$0xff]
    %v332 = vld [vmem:[#allocation7 + $0x10] sm:$0xff]
    %v333 = vld [vmem:[#allocation7 + $0x18] sm:$0xff]
    %v334 = vld [vmem:[#allocation7 + $0x20] sm:$0xff]
    %v335 = vld [vmem:[#allocation7 + $0x28] sm:$0xff]
    %v336 = vld [vmem:[#allocation7 + $0x30] sm:$0xff]
    %v337 = vld [vmem:[#allocation7 + $0x38] sm:$0xff]
    %v338 = vld [vmem:[#allocation7 + $0x40] sm:$0xff]
    %v339 = vld [vmem:[#allocation7 + $0x48] sm:$0xff]
    %v340 = vld [vmem:[#allocation7 + $0x50] sm:$0xff]
    %v341 = vld [vmem:[#allocation7 + $0x58] sm:$0xff]
    %v342 = vld [vmem:[#allocation7 + $0x60] sm:$0xff]
    %v343 = vld [vmem:[#allocation7 + $0x68] sm:$0xff]
    %v344 = vld [vmem:[#allocation7 + $0x70] sm:$0xff]
    %v345 = vld [vmem:[#allocation7 + $0x78] sm:$0xff]
    %v346 = vld [vmem:[#allocation7 + $0x80] sm:$0xff]
    %v347 = vld [vmem:[#allocation7 + $0x88] sm:$0xff]
    %v348 = vld [vmem:[#allocation7 + $0x90] sm:$0xff]
    %v349 = vld [vmem:[#allocation7 + $0x98] sm:$0xff]
    %v350 = vld [vmem:[#allocation7 + $0xa0] sm:$0xff]
    %v351 = vld [vmem:[#allocation7 + $0xa8] sm:$0xff]
    %v352 = vld [vmem:[#allocation7 + $0xb0] sm:$0xff]
    %v353 = vld [vmem:[#allocation7 + $0xb8] sm:$0xff]
    %v354 = vld [vmem:[#allocation7 + $0xc0] sm:$0xff]
    %v355 = vld [vmem:[#allocation7 + $0xc8] sm:$0xff]
    %v356 = vld [vmem:[#allocation7 + $0xd0] sm:$0xff]
    %v357 = vld [vmem:[#allocation7 + $0xd8] sm:$0xff]
    %v358 = vld [vmem:[#allocation7 + $0xe0] sm:$0xff]
    %v359 = vld [vmem:[#allocation7 + $0xe8] sm:$0xff]
    %v360 = vld [vmem:[#allocation7 + $0xf0] sm:$0xff]
    %v361 = vld [vmem:[#allocation7 + $0xf8] sm:$0xff]
    %v362 = vld [vmem:[#allocation7 + $0x100] sm:$0xff]
    %v363 = vld [vmem:[#allocation7 + $0x108] sm:$0xff]
    %v364 = vld [vmem:[#allocation7 + $0x110] sm:$0xff]
    %v365 = vld [vmem:[#allocation7 + $0x118] sm:$0xff]
    %v366 = vld [vmem:[#allocation7 + $0x120] sm:$0xff]
    %v367 = vld [vmem:[#allocation7 + $0x128] sm:$0xff]
    %v368 = vld [vmem:[#allocation7 + $0x130] sm:$0xff]
    %v369 = vld [vmem:[#allocation7 + $0x138] sm:$0xff]
    %v370 = vld [vmem:[#allocation7 + $0x140] sm:$0xff]
    %v371 = vld [vmem:[#allocation7 + $0x148] sm:$0xff]
    %v372 = vld [vmem:[#allocation7 + $0x150] sm:$0xff]
    %v373 = vld [vmem:[#allocation7 + $0x158] sm:$0xff]
    %v374 = vld [vmem:[#allocation7 + $0x160] sm:$0xff]
    %v375 = vld [vmem:[#allocation7 + $0x168] sm:$0xff]
    %v376 = vld [vmem:[#allocation7 + $0x170] sm:$0xff]
    %v377 = vld [vmem:[#allocation7 + $0x178] sm:$0xff]
    %v378 = vld [vmem:[#allocation7 + $0x180] sm:$0xff]
    %v379 = vld [vmem:[#allocation7 + $0x188] sm:$0xff]
    %v380 = vld [vmem:[#allocation7 + $0x190] sm:$0xff]
    %v381 = vld [vmem:[#allocation7 + $0x198] sm:$0xff]
    %v382 = vld [vmem:[#allocation7 + $0x1a0] sm:$0xff]
    %v383 = vld [vmem:[#allocation7 + $0x1a8] sm:$0xff]
    %v384 = vld [vmem:[#allocation7 + $0x1b0] sm:$0xff]
    %v385 = vld [vmem:[#allocation7 + $0x1b8] sm:$0xff]
    %v386 = vld [vmem:[#allocation7 + $0x1c0] sm:$0xff]
    %v387 = vld [vmem:[#allocation7 + $0x1c8] sm:$0xff]
    %v388 = vld [vmem:[#allocation7 + $0x1d0] sm:$0xff]
    %v389 = vld [vmem:[#allocation7 + $0x1d8] sm:$0xff]
    %v390 = vld [vmem:[#allocation7 + $0x1e0] sm:$0xff]
    %v391 = vld [vmem:[#allocation7 + $0x1e8] sm:$0xff]
    %v392 = vld [vmem:[#allocation7 + $0x1f0] sm:$0xff]
    %v393 = vld [vmem:[#allocation7 + $0x1f8] sm:$0xff]
    %v394 = vld [vmem:[#allocation7 + $0x200] sm:$0xff]
    %v395 = vld [vmem:[#allocation7 + $0x208] sm:$0xff]
    %v396 = vld [vmem:[#allocation7 + $0x210] sm:$0xff]
    %v397 = vld [vmem:[#allocation7 + $0x218] sm:$0xff]
    %v398 = vld [vmem:[#allocation7 + $0x220] sm:$0xff]
    %v399 = vld [vmem:[#allocation7 + $0x228] sm:$0xff]
    %v400 = vld [vmem:[#allocation7 + $0x230] sm:$0xff]
    %v401 = vld [vmem:[#allocation7 + $0x238] sm:$0xff]
    %v402 = vld [vmem:[#allocation7 + $0x240] sm:$0xff]
    %v403 = vld [vmem:[#allocation7 + $0x248] sm:$0xff]
    %v404 = vld [vmem:[#allocation7 + $0x250] sm:$0xff]
    %v405 = vld [vmem:[#allocation7 + $0x258] sm:$0xff]
    %v406 = vld [vmem:[#allocation7 + $0x260] sm:$0xff]
    %v407 = vld [vmem:[#allocation7 + $0x268] sm:$0xff]
    %v408 = vld [vmem:[#allocation7 + $0x270] sm:$0xff]
    %v409 = vld [vmem:[#allocation7 + $0x278] sm:$0xff]
    %v410 = vld [vmem:[#allocation7 + $0x280] sm:$0xff]
    %v411 = vld [vmem:[#allocation7 + $0x288] sm:$0xff]
    %v412 = vld [vmem:[#allocation7 + $0x290] sm:$0xff]
    %v413 = vld [vmem:[#allocation7 + $0x298] sm:$0xff]
    %v414 = vld [vmem:[#allocation7 + $0x2a0] sm:$0xff]
    %v415 = vld [vmem:[#allocation7 + $0x2a8] sm:$0xff]
    %v416 = vld [vmem:[#allocation7 + $0x2b0] sm:$0xff]
    %v417 = vld [vmem:[#allocation7 + $0x2b8] sm:$0xff]
    %v418 = vld [vmem:[#allocation7 + $0x2c0] sm:$0xff]
    %v419 = vld [vmem:[#allocation7 + $0x2c8] sm:$0xff]
    %v420 = vld [vmem:[#allocation7 + $0x2d0] sm:$0xff]
    %v421 = vld [vmem:[#allocation7 + $0x2d8] sm:$0xff]
    %v422 = vld [vmem:[#allocation7 + $0x2e0] sm:$0xff]
    %v423 = vld [vmem:[#allocation7 + $0x2e8] sm:$0xff]
    %v424 = vld [vmem:[#allocation7 + $0x2f0] sm:$0xff]
    %v425 = vld [vmem:[#allocation7 + $0x2f8] sm:$0xff]
    %v426 = vld [vmem:[#allocation7 + $0x300] sm:$0xff]
    %v427 = vld [vmem:[#allocation7 + $0x308] sm:$0xff]
    %v428 = vld [vmem:[#allocation7 + $0x310] sm:$0xff]
    %v429 = vld [vmem:[#allocation7 + $0x318] sm:$0xff]
    %v430 = vld [vmem:[#allocation7 + $0x320] sm:$0xff]
    %v431 = vld [vmem:[#allocation7 + $0x328] sm:$0xff]
    %v432 = vld [vmem:[#allocation7 + $0x330] sm:$0xff]
    %v433 = vld [vmem:[#allocation7 + $0x338] sm:$0xff]
    %v434 = vld [vmem:[#allocation7 + $0x340] sm:$0xff]
    %v435 = vld [vmem:[#allocation7 + $0x348] sm:$0xff]
    %v436 = vld [vmem:[#allocation7 + $0x350] sm:$0xff]
    %v437 = vld [vmem:[#allocation7 + $0x358] sm:$0xff]
    %v438 = vld [vmem:[#allocation7 + $0x360] sm:$0xff]
    %v439 = vld [vmem:[#allocation7 + $0x368] sm:$0xff]
    %v440 = vld [vmem:[#allocation7 + $0x370] sm:$0xff]
    %v441 = vld [vmem:[#allocation7 + $0x378] sm:$0xff]
    %v442 = vld [vmem:[#allocation7 + $0x380] sm:$0xff]
    %v443 = vld [vmem:[#allocation7 + $0x388] sm:$0xff]
    %v444 = vld [vmem:[#allocation7 + $0x390] sm:$0xff]
    %v445 = vld [vmem:[#allocation7 + $0x398] sm:$0xff]
    %v446 = vld [vmem:[#allocation7 + $0x3a0] sm:$0xff]
    %v447 = vld [vmem:[#allocation7 + $0x3a8] sm:$0xff]
    %v448 = vld [vmem:[#allocation7 + $0x3b0] sm:$0xff]
    %v449 = vld [vmem:[#allocation7 + $0x3b8] sm:$0xff]
    %v450 = vld [vmem:[#allocation7 + $0x3c0] sm:$0xff]
    %v451 = vld [vmem:[#allocation7 + $0x3c8] sm:$0xff]
    %v452 = vld [vmem:[#allocation7 + $0x3d0] sm:$0xff]
    %v453 = vld [vmem:[#allocation7 + $0x3d8] sm:$0xff]
    %v454 = vld [vmem:[#allocation7 + $0x3e0] sm:$0xff]
    %v455 = vld [vmem:[#allocation7 + $0x3e8] sm:$0xff]
    %v456 = vld [vmem:[#allocation7 + $0x3f0] sm:$0xff]
    %v457 = vld [vmem:[#allocation7 + $0x3f8] sm:$0xff]
    %v458 = vld [vmem:[#allocation7 + $0x400] sm:$0xff]
    %v459 = vld [vmem:[#allocation7 + $0x408] sm:$0xff]
    %v460 = vld [vmem:[#allocation7 + $0x410] sm:$0xff]
    %v461 = vld [vmem:[#allocation7 + $0x418] sm:$0xff]
    %v462 = vld [vmem:[#allocation7 + $0x420] sm:$0xff]
    %v463 = vld [vmem:[#allocation7 + $0x428] sm:$0xff]
    %v464 = vld [vmem:[#allocation7 + $0x430] sm:$0xff]
    %v465 = vld [vmem:[#allocation7 + $0x438] sm:$0xff]
    %v466 = vld [vmem:[#allocation7 + $0x440] sm:$0xff]
    %v467 = vld [vmem:[#allocation7 + $0x448] sm:$0xff]
    %v468 = vld [vmem:[#allocation7 + $0x450] sm:$0xff]
    %v469 = vld [vmem:[#allocation7 + $0x458] sm:$0xff]
    %v470 = vld [vmem:[#allocation7 + $0x460] sm:$0xff]
    %v471 = vld [vmem:[#allocation7 + $0x468] sm:$0xff]
    %v472 = vld [vmem:[#allocation7 + $0x470] sm:$0xff]
    %v473 = vld [vmem:[#allocation7 + $0x478] sm:$0xff]
    %v474 = vld [vmem:[#allocation7 + $0x480] sm:$0xff]
    %v475 = vld [vmem:[#allocation7 + $0x488] sm:$0xff]
    %v476 = vld [vmem:[#allocation7 + $0x490] sm:$0xff]
    %v477 = vld [vmem:[#allocation7 + $0x498] sm:$0xff]
    %v478 = vld [vmem:[#allocation7 + $0x4a0] sm:$0xff]
    %v479 = vld [vmem:[#allocation7 + $0x4a8] sm:$0xff]
    %v480 = vld [vmem:[#allocation7 + $0x4b0] sm:$0xff]
    %v481 = vld [vmem:[#allocation7 + $0x4b8] sm:$0xff]
    %v482 = vld [vmem:[#allocation7 + $0x4c0] sm:$0xff]
    %v483 = vld [vmem:[#allocation7 + $0x4c8] sm:$0xff]
    %v484 = vld [vmem:[#allocation7 + $0x4d0] sm:$0xff]
    %v485 = vld [vmem:[#allocation7 + $0x4d8] sm:$0xff]
    %v486 = vld [vmem:[#allocation7 + $0x4e0] sm:$0xff]
    %v487 = vld [vmem:[#allocation7 + $0x4e8] sm:$0xff]
    %v488 = vld [vmem:[#allocation7 + $0x4f0] sm:$0xff]
    %v489 = vld [vmem:[#allocation7 + $0x4f8] sm:$0xff]
    %v490 = vld [vmem:[#allocation7 + $0x500] sm:$0xff]
    %v491 = vld [vmem:[#allocation7 + $0x508] sm:$0xff]
    %v492 = vld [vmem:[#allocation7 + $0x510] sm:$0xff]
    %v493 = vld [vmem:[#allocation7 + $0x518] sm:$0xff]
    %v494 = vld [vmem:[#allocation7 + $0x520] sm:$0xff]
    %v495 = vld [vmem:[#allocation7 + $0x528] sm:$0xff]
    %v496 = vld [vmem:[#allocation7 + $0x530] sm:$0xff]
    %v497 = vld [vmem:[#allocation7 + $0x538] sm:$0xff]
    %v498 = vld [vmem:[#allocation7 + $0x540] sm:$0xff]
    %v499 = vld [vmem:[#allocation7 + $0x548] sm:$0xff]
    %v500 = vld [vmem:[#allocation7 + $0x550] sm:$0xff]
    %v501 = vld [vmem:[#allocation7 + $0x558] sm:$0xff]
    %v502 = vld [vmem:[#allocation7 + $0x560] sm:$0xff]
    %v503 = vld [vmem:[#allocation7 + $0x568] sm:$0xff]
    %v504 = vld [vmem:[#allocation7 + $0x570] sm:$0xff]
    %v505 = vld [vmem:[#allocation7 + $0x578] sm:$0xff]
    %v506 = vld [vmem:[#allocation7 + $0x580] sm:$0xff]
    %v507 = vld [vmem:[#allocation7 + $0x588] sm:$0xff]
    %v508 = vld [vmem:[#allocation7 + $0x590] sm:$0xff]
    %v509 = vld [vmem:[#allocation7 + $0x598] sm:$0xff]
    %v510 = vld [vmem:[#allocation7 + $0x5a0] sm:$0xff]
    %v511 = vld [vmem:[#allocation7 + $0x5a8] sm:$0xff]
    %v512 = vld [vmem:[#allocation7 + $0x5b0] sm:$0xff]
    %v513 = vld [vmem:[#allocation7 + $0x5b8] sm:$0xff]
    %v514 = vld [vmem:[#allocation7 + $0x5c0] sm:$0xff]
    %v515 = vld [vmem:[#allocation7 + $0x5c8] sm:$0xff]
    %v516 = vld [vmem:[#allocation7 + $0x5d0] sm:$0xff]
    %v517 = vld [vmem:[#allocation7 + $0x5d8] sm:$0xff]
    %v518 = vld [vmem:[#allocation7 + $0x5e0] sm:$0xff]
    %v519 = vld [vmem:[#allocation7 + $0x5e8] sm:$0xff]
    %v520 = vld [vmem:[#allocation7 + $0x5f0] sm:$0xff]
    %v521 = vld [vmem:[#allocation7 + $0x5f8] sm:$0xff]
    %v714 = vunpack.c.l.b16 %v330
    %v715 = vunpack.c.h.b16 %v330
    %v716 = vunpack.c.l.b16 %v331
    %v717 = vunpack.c.h.b16 %v331
    %v718 = vunpack.c.l.b16 %v332
    %v719 = vunpack.c.h.b16 %v332
    %v720 = vunpack.c.l.b16 %v333
    %v721 = vunpack.c.h.b16 %v333
    %v722 = vunpack.c.l.b16 %v334
    %v723 = vunpack.c.h.b16 %v334
    %v724 = vunpack.c.l.b16 %v335
    %v725 = vunpack.c.h.b16 %v335
    %v726 = vunpack.c.l.b16 %v336
    %v727 = vunpack.c.h.b16 %v336
    %v728 = vunpack.c.l.b16 %v337
    %v729 = vunpack.c.h.b16 %v337
    %v730 = vunpack.c.l.b16 %v338
    %v731 = vunpack.c.h.b16 %v338
    %v732 = vunpack.c.l.b16 %v339
    %v733 = vunpack.c.h.b16 %v339
    %v734 = vunpack.c.l.b16 %v340
    %v735 = vunpack.c.h.b16 %v340
    %v736 = vunpack.c.l.b16 %v341
    %v737 = vunpack.c.h.b16 %v341
    %v738 = vunpack.c.l.b16 %v342
    %v739 = vunpack.c.h.b16 %v342
    %v740 = vunpack.c.l.b16 %v343
    %v741 = vunpack.c.h.b16 %v343
    %v742 = vunpack.c.l.b16 %v344
    %v743 = vunpack.c.h.b16 %v344
    %v744 = vunpack.c.l.b16 %v345
    %v745 = vunpack.c.h.b16 %v345
    %v746 = vunpack.c.l.b16 %v346
    %v747 = vunpack.c.h.b16 %v346
    %v748 = vunpack.c.l.b16 %v347
    %v749 = vunpack.c.h.b16 %v347
    %v750 = vunpack.c.l.b16 %v348
    %v751 = vunpack.c.h.b16 %v348
    %v752 = vunpack.c.l.b16 %v349
    %v753 = vunpack.c.h.b16 %v349
    %v754 = vunpack.c.l.b16 %v350
    %v755 = vunpack.c.h.b16 %v350
    %v756 = vunpack.c.l.b16 %v351
    %v757 = vunpack.c.h.b16 %v351
    %v758 = vunpack.c.l.b16 %v352
    %v759 = vunpack.c.h.b16 %v352
    %v760 = vunpack.c.l.b16 %v353
    %v761 = vunpack.c.h.b16 %v353
    %v762 = vunpack.c.l.b16 %v354
    %v763 = vunpack.c.h.b16 %v354
    %v764 = vunpack.c.l.b16 %v355
    %v765 = vunpack.c.h.b16 %v355
    %v766 = vunpack.c.l.b16 %v356
    %v767 = vunpack.c.h.b16 %v356
    %v768 = vunpack.c.l.b16 %v357
    %v769 = vunpack.c.h.b16 %v357
    %v770 = vunpack.c.l.b16 %v358
    %v771 = vunpack.c.h.b16 %v358
    %v772 = vunpack.c.l.b16 %v359
    %v773 = vunpack.c.h.b16 %v359
    %v774 = vunpack.c.l.b16 %v360
    %v775 = vunpack.c.h.b16 %v360
    %v776 = vunpack.c.l.b16 %v361
    %v777 = vunpack.c.h.b16 %v361
    %v778 = vunpack.c.l.b16 %v362
    %v779 = vunpack.c.h.b16 %v362
    %v780 = vunpack.c.l.b16 %v363
    %v781 = vunpack.c.h.b16 %v363
    %v782 = vunpack.c.l.b16 %v364
    %v783 = vunpack.c.h.b16 %v364
    %v784 = vunpack.c.l.b16 %v365
    %v785 = vunpack.c.h.b16 %v365
    %v786 = vunpack.c.l.b16 %v366
    %v787 = vunpack.c.h.b16 %v366
    %v788 = vunpack.c.l.b16 %v367
    %v789 = vunpack.c.h.b16 %v367
    %v790 = vunpack.c.l.b16 %v368
    %v791 = vunpack.c.h.b16 %v368
    %v792 = vunpack.c.l.b16 %v369
    %v793 = vunpack.c.h.b16 %v369
    %v794 = vunpack.c.l.b16 %v370
    %v795 = vunpack.c.h.b16 %v370
    %v796 = vunpack.c.l.b16 %v371
    %v797 = vunpack.c.h.b16 %v371
    %v798 = vunpack.c.l.b16 %v372
    %v799 = vunpack.c.h.b16 %v372
    %v800 = vunpack.c.l.b16 %v373
    %v801 = vunpack.c.h.b16 %v373
    %v802 = vunpack.c.l.b16 %v374
    %v803 = vunpack.c.h.b16 %v374
    %v804 = vunpack.c.l.b16 %v375
    %v805 = vunpack.c.h.b16 %v375
    %v806 = vunpack.c.l.b16 %v376
    %v807 = vunpack.c.h.b16 %v376
    %v808 = vunpack.c.l.b16 %v377
    %v809 = vunpack.c.h.b16 %v377
    %v810 = vunpack.c.l.b16 %v378
    %v811 = vunpack.c.h.b16 %v378
    %v812 = vunpack.c.l.b16 %v379
    %v813 = vunpack.c.h.b16 %v379
    %v814 = vunpack.c.l.b16 %v380
    %v815 = vunpack.c.h.b16 %v380
    %v816 = vunpack.c.l.b16 %v381
    %v817 = vunpack.c.h.b16 %v381
    %v818 = vunpack.c.l.b16 %v382
    %v819 = vunpack.c.h.b16 %v382
    %v820 = vunpack.c.l.b16 %v383
    %v821 = vunpack.c.h.b16 %v383
    %v822 = vunpack.c.l.b16 %v384
    %v823 = vunpack.c.h.b16 %v384
    %v824 = vunpack.c.l.b16 %v385
    %v825 = vunpack.c.h.b16 %v385
    %v826 = vunpack.c.l.b16 %v386
    %v827 = vunpack.c.h.b16 %v386
    %v828 = vunpack.c.l.b16 %v387
    %v829 = vunpack.c.h.b16 %v387
    %v830 = vunpack.c.l.b16 %v388
    %v831 = vunpack.c.h.b16 %v388
    %v832 = vunpack.c.l.b16 %v389
    %v833 = vunpack.c.h.b16 %v389
    %v834 = vunpack.c.l.b16 %v390
    %v835 = vunpack.c.h.b16 %v390
    %v836 = vunpack.c.l.b16 %v391
    %v837 = vunpack.c.h.b16 %v391
    %v838 = vunpack.c.l.b16 %v392
    %v839 = vunpack.c.h.b16 %v392
    %v840 = vunpack.c.l.b16 %v393
    %v841 = vunpack.c.h.b16 %v393
    %v842 = vunpack.c.l.b16 %v394
    %v843 = vunpack.c.h.b16 %v394
    %v844 = vunpack.c.l.b16 %v395
    %v845 = vunpack.c.h.b16 %v395
    %v846 = vunpack.c.l.b16 %v396
    %v847 = vunpack.c.h.b16 %v396
    %v848 = vunpack.c.l.b16 %v397
    %v849 = vunpack.c.h.b16 %v397
    %v850 = vunpack.c.l.b16 %v398
    %v851 = vunpack.c.h.b16 %v398
    %v852 = vunpack.c.l.b16 %v399
    %v853 = vunpack.c.h.b16 %v399
    %v854 = vunpack.c.l.b16 %v400
    %v855 = vunpack.c.h.b16 %v400
    %v856 = vunpack.c.l.b16 %v401
    %v857 = vunpack.c.h.b16 %v401
    %v858 = vunpack.c.l.b16 %v402
    %v859 = vunpack.c.h.b16 %v402
    %v860 = vunpack.c.l.b16 %v403
    %v861 = vunpack.c.h.b16 %v403
    %v862 = vunpack.c.l.b16 %v404
    %v863 = vunpack.c.h.b16 %v404
    %v864 = vunpack.c.l.b16 %v405
    %v865 = vunpack.c.h.b16 %v405
    %v866 = vunpack.c.l.b16 %v406
    %v867 = vunpack.c.h.b16 %v406
    %v868 = vunpack.c.l.b16 %v407
    %v869 = vunpack.c.h.b16 %v407
    %v870 = vunpack.c.l.b16 %v408
    %v871 = vunpack.c.h.b16 %v408
    %v872 = vunpack.c.l.b16 %v409
    %v873 = vunpack.c.h.b16 %v409
    %v874 = vunpack.c.l.b16 %v410
    %v875 = vunpack.c.h.b16 %v410
    %v876 = vunpack.c.l.b16 %v411
    %v877 = vunpack.c.h.b16 %v411
    %v878 = vunpack.c.l.b16 %v412
    %v879 = vunpack.c.h.b16 %v412
    %v880 = vunpack.c.l.b16 %v413
    %v881 = vunpack.c.h.b16 %v413
    %v882 = vunpack.c.l.b16 %v414
    %v883 = vunpack.c.h.b16 %v414
    %v884 = vunpack.c.l.b16 %v415
    %v885 = vunpack.c.h.b16 %v415
    %v886 = vunpack.c.l.b16 %v416
    %v887 = vunpack.c.h.b16 %v416
    %v888 = vunpack.c.l.b16 %v417
    %v889 = vunpack.c.h.b16 %v417
    %v890 = vunpack.c.l.b16 %v418
    %v891 = vunpack.c.h.b16 %v418
    %v892 = vunpack.c.l.b16 %v419
    %v893 = vunpack.c.h.b16 %v419
    %v894 = vunpack.c.l.b16 %v420
    %v895 = vunpack.c.h.b16 %v420
    %v896 = vunpack.c.l.b16 %v421
    %v897 = vunpack.c.h.b16 %v421
    %v898 = vunpack.c.l.b16 %v422
    %v899 = vunpack.c.h.b16 %v422
    %v900 = vunpack.c.l.b16 %v423
    %v901 = vunpack.c.h.b16 %v423
    %v902 = vunpack.c.l.b16 %v424
    %v903 = vunpack.c.h.b16 %v424
    %v904 = vunpack.c.l.b16 %v425
    %v905 = vunpack.c.h.b16 %v425
    %v906 = vunpack.c.l.b16 %v426
    %v907 = vunpack.c.h.b16 %v426
    %v908 = vunpack.c.l.b16 %v427
    %v909 = vunpack.c.h.b16 %v427
    %v910 = vunpack.c.l.b16 %v428
    %v911 = vunpack.c.h.b16 %v428
    %v912 = vunpack.c.l.b16 %v429
    %v913 = vunpack.c.h.b16 %v429
    %v914 = vunpack.c.l.b16 %v430
    %v915 = vunpack.c.h.b16 %v430
    %v916 = vunpack.c.l.b16 %v431
    %v917 = vunpack.c.h.b16 %v431
    %v918 = vunpack.c.l.b16 %v432
    %v919 = vunpack.c.h.b16 %v432
    %v920 = vunpack.c.l.b16 %v433
    %v921 = vunpack.c.h.b16 %v433
    %v922 = vunpack.c.l.b16 %v434
    %v923 = vunpack.c.h.b16 %v434
    %v924 = vunpack.c.l.b16 %v435
    %v925 = vunpack.c.h.b16 %v435
    %v926 = vunpack.c.l.b16 %v436
    %v927 = vunpack.c.h.b16 %v436
    %v928 = vunpack.c.l.b16 %v437
    %v929 = vunpack.c.h.b16 %v437
    %v930 = vunpack.c.l.b16 %v438
    %v931 = vunpack.c.h.b16 %v438
    %v932 = vunpack.c.l.b16 %v439
    %v933 = vunpack.c.h.b16 %v439
    %v934 = vunpack.c.l.b16 %v440
    %v935 = vunpack.c.h.b16 %v440
    %v936 = vunpack.c.l.b16 %v441
    %v937 = vunpack.c.h.b16 %v441
    %v938 = vunpack.c.l.b16 %v442
    %v939 = vunpack.c.h.b16 %v442
    %v940 = vunpack.c.l.b16 %v443
    %v941 = vunpack.c.h.b16 %v443
    %v942 = vunpack.c.l.b16 %v444
    %v943 = vunpack.c.h.b16 %v444
    %v944 = vunpack.c.l.b16 %v445
    %v945 = vunpack.c.h.b16 %v445
    %v946 = vunpack.c.l.b16 %v446
    %v947 = vunpack.c.h.b16 %v446
    %v948 = vunpack.c.l.b16 %v447
    %v949 = vunpack.c.h.b16 %v447
    %v950 = vunpack.c.l.b16 %v448
    %v951 = vunpack.c.h.b16 %v448
    %v952 = vunpack.c.l.b16 %v449
    %v953 = vunpack.c.h.b16 %v449
    %v954 = vunpack.c.l.b16 %v450
    %v955 = vunpack.c.h.b16 %v450
    %v956 = vunpack.c.l.b16 %v451
    %v957 = vunpack.c.h.b16 %v451
    %v958 = vunpack.c.l.b16 %v452
    %v959 = vunpack.c.h.b16 %v452
    %v960 = vunpack.c.l.b16 %v453
    %v961 = vunpack.c.h.b16 %v453
    %v962 = vunpack.c.l.b16 %v454
    %v963 = vunpack.c.h.b16 %v454
    %v964 = vunpack.c.l.b16 %v455
    %v965 = vunpack.c.h.b16 %v455
    %v966 = vunpack.c.l.b16 %v456
    %v967 = vunpack.c.h.b16 %v456
    %v968 = vunpack.c.l.b16 %v457
    %v969 = vunpack.c.h.b16 %v457
    %v970 = vunpack.c.l.b16 %v458
    %v971 = vunpack.c.h.b16 %v458
    %v972 = vunpack.c.l.b16 %v459
    %v973 = vunpack.c.h.b16 %v459
    %v974 = vunpack.c.l.b16 %v460
    %v975 = vunpack.c.h.b16 %v460
    %v976 = vunpack.c.l.b16 %v461
    %v977 = vunpack.c.h.b16 %v461
    %v978 = vunpack.c.l.b16 %v462
    %v979 = vunpack.c.h.b16 %v462
    %v980 = vunpack.c.l.b16 %v463
    %v981 = vunpack.c.h.b16 %v463
    %v982 = vunpack.c.l.b16 %v464
    %v983 = vunpack.c.h.b16 %v464
    %v984 = vunpack.c.l.b16 %v465
    %v985 = vunpack.c.h.b16 %v465
    %v986 = vunpack.c.l.b16 %v466
    %v987 = vunpack.c.h.b16 %v466
    %v988 = vunpack.c.l.b16 %v467
    %v989 = vunpack.c.h.b16 %v467
    %v990 = vunpack.c.l.b16 %v468
    %v991 = vunpack.c.h.b16 %v468
    %v992 = vunpack.c.l.b16 %v469
    %v993 = vunpack.c.h.b16 %v469
    %v994 = vunpack.c.l.b16 %v470
    %v995 = vunpack.c.h.b16 %v470
    %v996 = vunpack.c.l.b16 %v471
    %v997 = vunpack.c.h.b16 %v471
    %v998 = vunpack.c.l.b16 %v472
    %v999 = vunpack.c.h.b16 %v472
    %v1000 = vunpack.c.l.b16 %v473
    %v1001 = vunpack.c.h.b16 %v473
    %v1002 = vunpack.c.l.b16 %v474
    %v1003 = vunpack.c.h.b16 %v474
    %v1004 = vunpack.c.l.b16 %v475
    %v1005 = vunpack.c.h.b16 %v475
    %v1006 = vunpack.c.l.b16 %v476
    %v1007 = vunpack.c.h.b16 %v476
    %v1008 = vunpack.c.l.b16 %v477
    %v1009 = vunpack.c.h.b16 %v477
    %v1010 = vunpack.c.l.b16 %v478
    %v1011 = vunpack.c.h.b16 %v478
    %v1012 = vunpack.c.l.b16 %v479
    %v1013 = vunpack.c.h.b16 %v479
    %v1014 = vunpack.c.l.b16 %v480
    %v1015 = vunpack.c.h.b16 %v480
    %v1016 = vunpack.c.l.b16 %v481
    %v1017 = vunpack.c.h.b16 %v481
    %v1018 = vunpack.c.l.b16 %v482
    %v1019 = vunpack.c.h.b16 %v482
    %v1020 = vunpack.c.l.b16 %v483
    %v1021 = vunpack.c.h.b16 %v483
    %v1022 = vunpack.c.l.b16 %v484
    %v1023 = vunpack.c.h.b16 %v484
    %v1024 = vunpack.c.l.b16 %v485
    %v1025 = vunpack.c.h.b16 %v485
    %v1026 = vunpack.c.l.b16 %v486
    %v1027 = vunpack.c.h.b16 %v486
    %v1028 = vunpack.c.l.b16 %v487
    %v1029 = vunpack.c.h.b16 %v487
    %v1030 = vunpack.c.l.b16 %v488
    %v1031 = vunpack.c.h.b16 %v488
    %v1032 = vunpack.c.l.b16 %v489
    %v1033 = vunpack.c.h.b16 %v489
    %v1034 = vunpack.c.l.b16 %v490
    %v1035 = vunpack.c.h.b16 %v490
    %v1036 = vunpack.c.l.b16 %v491
    %v1037 = vunpack.c.h.b16 %v491
    %v1038 = vunpack.c.l.b16 %v492
    %v1039 = vunpack.c.h.b16 %v492
    %v1040 = vunpack.c.l.b16 %v493
    %v1041 = vunpack.c.h.b16 %v493
    %v1042 = vunpack.c.l.b16 %v494
    %v1043 = vunpack.c.h.b16 %v494
    %v1044 = vunpack.c.l.b16 %v495
    %v1045 = vunpack.c.h.b16 %v495
    %v1046 = vunpack.c.l.b16 %v496
    %v1047 = vunpack.c.h.b16 %v496
    %v1048 = vunpack.c.l.b16 %v497
    %v1049 = vunpack.c.h.b16 %v497
    %v1050 = vunpack.c.l.b16 %v498
    %v1051 = vunpack.c.h.b16 %v498
    %v1052 = vunpack.c.l.b16 %v499
    %v1053 = vunpack.c.h.b16 %v499
    %v1054 = vunpack.c.l.b16 %v500
    %v1055 = vunpack.c.h.b16 %v500
    %v1056 = vunpack.c.l.b16 %v501
    %v1057 = vunpack.c.h.b16 %v501
    %v1058 = vunpack.c.l.b16 %v502
    %v1059 = vunpack.c.h.b16 %v502
    %v1060 = vunpack.c.l.b16 %v503
    %v1061 = vunpack.c.h.b16 %v503
    %v1062 = vunpack.c.l.b16 %v504
    %v1063 = vunpack.c.h.b16 %v504
    %v1064 = vunpack.c.l.b16 %v505
    %v1065 = vunpack.c.h.b16 %v505
    %v1066 = vunpack.c.l.b16 %v506
    %v1067 = vunpack.c.h.b16 %v506
    %v1068 = vunpack.c.l.b16 %v507
    %v1069 = vunpack.c.h.b16 %v507
    %v1070 = vunpack.c.l.b16 %v508
    %v1071 = vunpack.c.h.b16 %v508
    %v1072 = vunpack.c.l.b16 %v509
    %v1073 = vunpack.c.h.b16 %v509
    %v1074 = vunpack.c.l.b16 %v510
    %v1075 = vunpack.c.h.b16 %v510
    %v1076 = vunpack.c.l.b16 %v511
    %v1077 = vunpack.c.h.b16 %v511
    %v1078 = vunpack.c.l.b16 %v512
    %v1079 = vunpack.c.h.b16 %v512
    %v1080 = vunpack.c.l.b16 %v513
    %v1081 = vunpack.c.h.b16 %v513
    %v1082 = vunpack.c.l.b16 %v514
    %v1083 = vunpack.c.h.b16 %v514
    %v1084 = vunpack.c.l.b16 %v515
    %v1085 = vunpack.c.h.b16 %v515
    %v1086 = vunpack.c.l.b16 %v516
    %v1087 = vunpack.c.h.b16 %v516
    %v1088 = vunpack.c.l.b16 %v517
    %v1089 = vunpack.c.h.b16 %v517
    %v1090 = vunpack.c.l.b16 %v518
    %v1091 = vunpack.c.h.b16 %v518
    %v1092 = vunpack.c.l.b16 %v519
    %v1093 = vunpack.c.h.b16 %v519
    %v1094 = vunpack.c.l.b16 %v520
    %v1095 = vunpack.c.h.b16 %v520
    %v1096 = vunpack.c.l.b16 %v521
    %v1097 = vunpack.c.h.b16 %v521
    %v1098 = vpack.c.b16 %v718, %v714
    %v1099 = vpack.c.b16 %v719, %v715
    %v1100 = vpack.c.b16 %v720, %v716
    %v1101 = vpack.c.b16 %v721, %v717
    %v1102 = vpack.c.b16 %v726, %v722
    %v1103 = vpack.c.b16 %v727, %v723
    %v1104 = vpack.c.b16 %v728, %v724
    %v1105 = vpack.c.b16 %v729, %v725
    %v1106 = vpack.c.b16 %v734, %v730
    %v1107 = vpack.c.b16 %v735, %v731
    %v1108 = vpack.c.b16 %v736, %v732
    %v1109 = vpack.c.b16 %v737, %v733
    %v1110 = vpack.c.b16 %v742, %v738
    %v1111 = vpack.c.b16 %v743, %v739
    %v1112 = vpack.c.b16 %v744, %v740
    %v1113 = vpack.c.b16 %v745, %v741
    %v1114 = vpack.c.b16 %v750, %v746
    %v1115 = vpack.c.b16 %v751, %v747
    %v1116 = vpack.c.b16 %v752, %v748
    %v1117 = vpack.c.b16 %v753, %v749
    %v1118 = vpack.c.b16 %v758, %v754
    %v1119 = vpack.c.b16 %v759, %v755
    %v1120 = vpack.c.b16 %v760, %v756
    %v1121 = vpack.c.b16 %v761, %v757
    %v1122 = vpack.c.b16 %v766, %v762
    %v1123 = vpack.c.b16 %v767, %v763
    %v1124 = vpack.c.b16 %v768, %v764
    %v1125 = vpack.c.b16 %v769, %v765
    %v1126 = vpack.c.b16 %v774, %v770
    %v1127 = vpack.c.b16 %v775, %v771
    %v1128 = vpack.c.b16 %v776, %v772
    %v1129 = vpack.c.b16 %v777, %v773
    %v1130 = vpack.c.b16 %v782, %v778
    %v1131 = vpack.c.b16 %v783, %v779
    %v1132 = vpack.c.b16 %v784, %v780
    %v1133 = vpack.c.b16 %v785, %v781
    %v1134 = vpack.c.b16 %v790, %v786
    %v1135 = vpack.c.b16 %v791, %v787
    %v1136 = vpack.c.b16 %v792, %v788
    %v1137 = vpack.c.b16 %v793, %v789
    %v1138 = vpack.c.b16 %v798, %v794
    %v1139 = vpack.c.b16 %v799, %v795
    %v1140 = vpack.c.b16 %v800, %v796
    %v1141 = vpack.c.b16 %v801, %v797
    %v1142 = vpack.c.b16 %v806, %v802
    %v1143 = vpack.c.b16 %v807, %v803
    %v1144 = vpack.c.b16 %v808, %v804
    %v1145 = vpack.c.b16 %v809, %v805
    %v1146 = vpack.c.b16 %v814, %v810
    %v1147 = vpack.c.b16 %v815, %v811
    %v1148 = vpack.c.b16 %v816, %v812
    %v1149 = vpack.c.b16 %v817, %v813
    %v1150 = vpack.c.b16 %v822, %v818
    %v1151 = vpack.c.b16 %v823, %v819
    %v1152 = vpack.c.b16 %v824, %v820
    %v1153 = vpack.c.b16 %v825, %v821
    %v1154 = vpack.c.b16 %v830, %v826
    %v1155 = vpack.c.b16 %v831, %v827
    %v1156 = vpack.c.b16 %v832, %v828
    %v1157 = vpack.c.b16 %v833, %v829
    %v1158 = vpack.c.b16 %v838, %v834
    %v1159 = vpack.c.b16 %v839, %v835
    %v1160 = vpack.c.b16 %v840, %v836
    %v1161 = vpack.c.b16 %v841, %v837
    %v1162 = vpack.c.b16 %v846, %v842
    %v1163 = vpack.c.b16 %v847, %v843
    %v1164 = vpack.c.b16 %v848, %v844
    %v1165 = vpack.c.b16 %v849, %v845
    %v1166 = vpack.c.b16 %v854, %v850
    %v1167 = vpack.c.b16 %v855, %v851
    %v1168 = vpack.c.b16 %v856, %v852
    %v1169 = vpack.c.b16 %v857, %v853
    %v1170 = vpack.c.b16 %v862, %v858
    %v1171 = vpack.c.b16 %v863, %v859
    %v1172 = vpack.c.b16 %v864, %v860
    %v1173 = vpack.c.b16 %v865, %v861
    %v1174 = vpack.c.b16 %v870, %v866
    %v1175 = vpack.c.b16 %v871, %v867
    %v1176 = vpack.c.b16 %v872, %v868
    %v1177 = vpack.c.b16 %v873, %v869
    %v1178 = vpack.c.b16 %v878, %v874
    %v1179 = vpack.c.b16 %v879, %v875
    %v1180 = vpack.c.b16 %v880, %v876
    %v1181 = vpack.c.b16 %v881, %v877
    %v1182 = vpack.c.b16 %v886, %v882
    %v1183 = vpack.c.b16 %v887, %v883
    %v1184 = vpack.c.b16 %v888, %v884
    %v1185 = vpack.c.b16 %v889, %v885
    %v1186 = vpack.c.b16 %v894, %v890
    %v1187 = vpack.c.b16 %v895, %v891
    %v1188 = vpack.c.b16 %v896, %v892
    %v1189 = vpack.c.b16 %v897, %v893
    %v1190 = vpack.c.b16 %v902, %v898
    %v1191 = vpack.c.b16 %v903, %v899
    %v1192 = vpack.c.b16 %v904, %v900
    %v1193 = vpack.c.b16 %v905, %v901
    %v1194 = vpack.c.b16 %v910, %v906
    %v1195 = vpack.c.b16 %v911, %v907
    %v1196 = vpack.c.b16 %v912, %v908
    %v1197 = vpack.c.b16 %v913, %v909
    %v1198 = vpack.c.b16 %v918, %v914
    %v1199 = vpack.c.b16 %v919, %v915
    %v1200 = vpack.c.b16 %v920, %v916
    %v1201 = vpack.c.b16 %v921, %v917
    %v1202 = vpack.c.b16 %v926, %v922
    %v1203 = vpack.c.b16 %v927, %v923
    %v1204 = vpack.c.b16 %v928, %v924
    %v1205 = vpack.c.b16 %v929, %v925
    %v1206 = vpack.c.b16 %v934, %v930
    %v1207 = vpack.c.b16 %v935, %v931
    %v1208 = vpack.c.b16 %v936, %v932
    %v1209 = vpack.c.b16 %v937, %v933
    %v1210 = vpack.c.b16 %v942, %v938
    %v1211 = vpack.c.b16 %v943, %v939
    %v1212 = vpack.c.b16 %v944, %v940
    %v1213 = vpack.c.b16 %v945, %v941
    %v1214 = vpack.c.b16 %v950, %v946
    %v1215 = vpack.c.b16 %v951, %v947
    %v1216 = vpack.c.b16 %v952, %v948
    %v1217 = vpack.c.b16 %v953, %v949
    %v1218 = vpack.c.b16 %v958, %v954
    %v1219 = vpack.c.b16 %v959, %v955
    %v1220 = vpack.c.b16 %v960, %v956
    %v1221 = vpack.c.b16 %v961, %v957
    %v1222 = vpack.c.b16 %v966, %v962
    %v1223 = vpack.c.b16 %v967, %v963
    %v1224 = vpack.c.b16 %v968, %v964
    %v1225 = vpack.c.b16 %v969, %v965
    %v1226 = vpack.c.b16 %v974, %v970
    %v1227 = vpack.c.b16 %v975, %v971
    %v1228 = vpack.c.b16 %v976, %v972
    %v1229 = vpack.c.b16 %v977, %v973
    %v1230 = vpack.c.b16 %v982, %v978
    %v1231 = vpack.c.b16 %v983, %v979
    %v1232 = vpack.c.b16 %v984, %v980
    %v1233 = vpack.c.b16 %v985, %v981
    %v1234 = vpack.c.b16 %v990, %v986
    %v1235 = vpack.c.b16 %v991, %v987
    %v1236 = vpack.c.b16 %v992, %v988
    %v1237 = vpack.c.b16 %v993, %v989
    %v1238 = vpack.c.b16 %v998, %v994
    %v1239 = vpack.c.b16 %v999, %v995
    %v1240 = vpack.c.b16 %v1000, %v996
    %v1241 = vpack.c.b16 %v1001, %v997
    %v1242 = vpack.c.b16 %v1006, %v1002
    %v1243 = vpack.c.b16 %v1007, %v1003
    %v1244 = vpack.c.b16 %v1008, %v1004
    %v1245 = vpack.c.b16 %v1009, %v1005
    %v1246 = vpack.c.b16 %v1014, %v1010
    %v1247 = vpack.c.b16 %v1015, %v1011
    %v1248 = vpack.c.b16 %v1016, %v1012
    %v1249 = vpack.c.b16 %v1017, %v1013
    %v1250 = vpack.c.b16 %v1022, %v1018
    %v1251 = vpack.c.b16 %v1023, %v1019
    %v1252 = vpack.c.b16 %v1024, %v1020
    %v1253 = vpack.c.b16 %v1025, %v1021
    %v1254 = vpack.c.b16 %v1030, %v1026
    %v1255 = vpack.c.b16 %v1031, %v1027
    %v1256 = vpack.c.b16 %v1032, %v1028
    %v1257 = vpack.c.b16 %v1033, %v1029
    %v1258 = vpack.c.b16 %v1038, %v1034
    %v1259 = vpack.c.b16 %v1039, %v1035
    %v1260 = vpack.c.b16 %v1040, %v1036
    %v1261 = vpack.c.b16 %v1041, %v1037
    %v1262 = vpack.c.b16 %v1046, %v1042
    %v1263 = vpack.c.b16 %v1047, %v1043
    %v1264 = vpack.c.b16 %v1048, %v1044
    %v1265 = vpack.c.b16 %v1049, %v1045
    %v1266 = vpack.c.b16 %v1054, %v1050
    %v1267 = vpack.c.b16 %v1055, %v1051
    %v1268 = vpack.c.b16 %v1056, %v1052
    %v1269 = vpack.c.b16 %v1057, %v1053
    %v1270 = vpack.c.b16 %v1062, %v1058
    %v1271 = vpack.c.b16 %v1063, %v1059
    %v1272 = vpack.c.b16 %v1064, %v1060
    %v1273 = vpack.c.b16 %v1065, %v1061
    %v1274 = vpack.c.b16 %v1070, %v1066
    %v1275 = vpack.c.b16 %v1071, %v1067
    %v1276 = vpack.c.b16 %v1072, %v1068
    %v1277 = vpack.c.b16 %v1073, %v1069
    %v1278 = vpack.c.b16 %v1078, %v1074
    %v1279 = vpack.c.b16 %v1079, %v1075
    %v1280 = vpack.c.b16 %v1080, %v1076
    %v1281 = vpack.c.b16 %v1081, %v1077
    %v1282 = vpack.c.b16 %v1086, %v1082
    %v1283 = vpack.c.b16 %v1087, %v1083
    %v1284 = vpack.c.b16 %v1088, %v1084
    %v1285 = vpack.c.b16 %v1089, %v1085
    %v1286 = vpack.c.b16 %v1094, %v1090
    %v1287 = vpack.c.b16 %v1095, %v1091
    %v1288 = vpack.c.b16 %v1096, %v1092
    %v1289 = vpack.c.b16 %v1097, %v1093
    %1482 = vmatpush.bf16.msra.mxu0 %v1126
    %1483 = vmatpush.bf16.msra.mxu0 %v1122
    %1484 = vmatpush.bf16.msra.mxu0 %v1118
    %1485 = vmatpush.bf16.msra.mxu0 %v1114
    %1486 = vmatpush.bf16.msra.mxu0 %v1110
    %1487 = vmatpush.bf16.msra.mxu0 %v1106
    %1488 = vmatpush.bf16.msra.mxu0 %v1102
    %1489 = vmatpush.bf16.msra.mxu0 %v1098
    %1490 = vmatmul.bf16.gmra.mxu0 %v132
    %v1491 = vpop.f32.mrf.mxu0
    %v1492 = vadd.f32 0.0, %v1491
    %v1493 = vpop.f32.mrf.mxu0
    %1494 = vdwg.mxu0
    %1495 = vmatpush.bf16.msra.mxu0 %v1158
    %1496 = vmatpush.bf16.msra.mxu0 %v1154
    %1497 = vmatpush.bf16.msra.mxu0 %v1150
    %1498 = vmatpush.bf16.msra.mxu0 %v1146
    %1499 = vmatpush.bf16.msra.mxu0 %v1142
    %1500 = vmatpush.bf16.msra.mxu0 %v1138
    %1501 = vmatpush.bf16.msra.mxu0 %v1134
    %1502 = vmatpush.bf16.msra.mxu0 %v1130
    %1503 = vmatmul.bf16.gmra.mxu0 %v133
    %v1504 = vpop.f32.mrf.mxu0
    %v1505 = vadd.f32 %v1492, %v1504
    %v1506 = vpop.f32.mrf.mxu0
    %1507 = vdwg.mxu0
    %1508 = vmatpush.bf16.msra.mxu0 %v1190
    %1509 = vmatpush.bf16.msra.mxu0 %v1186
    %1510 = vmatpush.bf16.msra.mxu0 %v1182
    %1511 = vmatpush.bf16.msra.mxu0 %v1178
    %1512 = vmatpush.bf16.msra.mxu0 %v1174
    %1513 = vmatpush.bf16.msra.mxu0 %v1170
    %1514 = vmatpush.bf16.msra.mxu0 %v1166
    %1515 = vmatpush.bf16.msra.mxu0 %v1162
    %1516 = vmatmul.bf16.gmra.mxu0 %v134
    %v1517 = vpop.f32.mrf.mxu0
    %v1518 = vadd.f32 %v1505, %v1517
    %v1519 = vpop.f32.mrf.mxu0
    %1520 = vdwg.mxu0
    %1521 = vmatpush.bf16.msra.mxu0 %v1222
    %1522 = vmatpush.bf16.msra.mxu0 %v1218
    %1523 = vmatpush.bf16.msra.mxu0 %v1214
    %1524 = vmatpush.bf16.msra.mxu0 %v1210
    %1525 = vmatpush.bf16.msra.mxu0 %v1206
    %1526 = vmatpush.bf16.msra.mxu0 %v1202
    %1527 = vmatpush.bf16.msra.mxu0 %v1198
    %1528 = vmatpush.bf16.msra.mxu0 %v1194
    %1529 = vmatmul.bf16.gmra.mxu0 %v135
    %v1530 = vpop.f32.mrf.mxu0
    %v1531 = vadd.f32 %v1518, %v1530
    %v1532 = vpop.f32.mrf.mxu0
    %1533 = vdwg.mxu0
    %1534 = vmatpush.bf16.msra.mxu0 %v1254
    %1535 = vmatpush.bf16.msra.mxu0 %v1250
    %1536 = vmatpush.bf16.msra.mxu0 %v1246
    %1537 = vmatpush.bf16.msra.mxu0 %v1242
    %1538 = vmatpush.bf16.msra.mxu0 %v1238
    %1539 = vmatpush.bf16.msra.mxu0 %v1234
    %1540 = vmatpush.bf16.msra.mxu0 %v1230
    %1541 = vmatpush.bf16.msra.mxu0 %v1226
    %1542 = vmatmul.bf16.gmra.mxu0 %v136
    %v1543 = vpop.f32.mrf.mxu0
    %v1544 = vadd.f32 %v1531, %v1543
    %v1545 = vpop.f32.mrf.mxu0
    %1546 = vdwg.mxu0
    %1547 = vmatpush.bf16.msra.mxu0 %v1286
    %1548 = vmatpush.bf16.msra.mxu0 %v1282
    %1549 = vmatpush.bf16.msra.mxu0 %v1278
    %1550 = vmatpush.bf16.msra.mxu0 %v1274
    %1551 = vmatpush.bf16.msra.mxu0 %v1270
    %1552 = vmatpush.bf16.msra.mxu0 %v1266
    %1553 = vmatpush.bf16.msra.mxu0 %v1262
    %1554 = vmatpush.bf16.msra.mxu0 %v1258
    %1555 = vmatmul.bf16.gmra.mxu0 %v137
    %v1556 = vpop.f32.mrf.mxu0
    %v1557 = vadd.f32 %v1544, %v1556
    %v1558 = vpop.f32.mrf.mxu0
    %1559 = vdwg.mxu0
    %1560 = vmatpush.bf16.msra.mxu0 %v1127
    %1561 = vmatpush.bf16.msra.mxu0 %v1123
    %1562 = vmatpush.bf16.msra.mxu0 %v1119
    %1563 = vmatpush.bf16.msra.mxu0 %v1115
    %1564 = vmatpush.bf16.msra.mxu0 %v1111
    %1565 = vmatpush.bf16.msra.mxu0 %v1107
    %1566 = vmatpush.bf16.msra.mxu0 %v1103
    %1567 = vmatpush.bf16.msra.mxu0 %v1099
    %1568 = vmatmul.bf16.gmra.mxu0 %v132
    %v1569 = vpop.f32.mrf.mxu0
    %v1570 = vadd.f32 0.0, %v1569
    %v1571 = vpop.f32.mrf.mxu0
    %1572 = vdwg.mxu0
    %1573 = vmatpush.bf16.msra.mxu0 %v1159
    %1574 = vmatpush.bf16.msra.mxu0 %v1155
    %1575 = vmatpush.bf16.msra.mxu0 %v1151
    %1576 = vmatpush.bf16.msra.mxu0 %v1147
    %1577 = vmatpush.bf16.msra.mxu0 %v1143
    %1578 = vmatpush.bf16.msra.mxu0 %v1139
    %1579 = vmatpush.bf16.msra.mxu0 %v1135
    %1580 = vmatpush.bf16.msra.mxu0 %v1131
    %1581 = vmatmul.bf16.gmra.mxu0 %v133
    %v1582 = vpop.f32.mrf.mxu0
    %v1583 = vadd.f32 %v1570, %v1582
    %v1584 = vpop.f32.mrf.mxu0
    %1585 = vdwg.mxu0
    %1586 = vmatpush.bf16.msra.mxu0 %v1191
    %1587 = vmatpush.bf16.msra.mxu0 %v1187
    %1588 = vmatpush.bf16.msra.mxu0 %v1183
    %1589 = vmatpush.bf16.msra.mxu0 %v1179
    %1590 = vmatpush.bf16.msra.mxu0 %v1175
    %1591 = vmatpush.bf16.msra.mxu0 %v1171
    %1592 = vmatpush.bf16.msra.mxu0 %v1167
    %1593 = vmatpush.bf16.msra.mxu0 %v1163
    %1594 = vmatmul.bf16.gmra.mxu0 %v134
    %v1595 = vpop.f32.mrf.mxu0
    %v1596 = vadd.f32 %v1583, %v1595
    %v1597 = vpop.f32.mrf.mxu0
    %1598 = vdwg.mxu0
    %1599 = vmatpush.bf16.msra.mxu0 %v1223
    %1600 = vmatpush.bf16.msra.mxu0 %v1219
    %1601 = vmatpush.bf16.msra.mxu0 %v1215
    %1602 = vmatpush.bf16.msra.mxu0 %v1211
    %1603 = vmatpush.bf16.msra.mxu0 %v1207
    %1604 = vmatpush.bf16.msra.mxu0 %v1203
    %1605 = vmatpush.bf16.msra.mxu0 %v1199
    %1606 = vmatpush.bf16.msra.mxu0 %v1195
    %1607 = vmatmul.bf16.gmra.mxu0 %v135
    %v1608 = vpop.f32.mrf.mxu0
    %v1609 = vadd.f32 %v1596, %v1608
    %v1610 = vpop.f32.mrf.mxu0
    %1611 = vdwg.mxu0
    %1612 = vmatpush.bf16.msra.mxu0 %v1255
    %1613 = vmatpush.bf16.msra.mxu0 %v1251
    %1614 = vmatpush.bf16.msra.mxu0 %v1247
    %1615 = vmatpush.bf16.msra.mxu0 %v1243
    %1616 = vmatpush.bf16.msra.mxu0 %v1239
    %1617 = vmatpush.bf16.msra.mxu0 %v1235
    %1618 = vmatpush.bf16.msra.mxu0 %v1231
    %1619 = vmatpush.bf16.msra.mxu0 %v1227
    %1620 = vmatmul.bf16.gmra.mxu0 %v136
    %v1621 = vpop.f32.mrf.mxu0
    %v1622 = vadd.f32 %v1609, %v1621
    %v1623 = vpop.f32.mrf.mxu0
    %1624 = vdwg.mxu0
    %1625 = vmatpush.bf16.msra.mxu0 %v1287
    %1626 = vmatpush.bf16.msra.mxu0 %v1283
    %1627 = vmatpush.bf16.msra.mxu0 %v1279
    %1628 = vmatpush.bf16.msra.mxu0 %v1275
    %1629 = vmatpush.bf16.msra.mxu0 %v1271
    %1630 = vmatpush.bf16.msra.mxu0 %v1267
    %1631 = vmatpush.bf16.msra.mxu0 %v1263
    %1632 = vmatpush.bf16.msra.mxu0 %v1259
    %1633 = vmatmul.bf16.gmra.mxu0 %v137
    %v1634 = vpop.f32.mrf.mxu0
    %v1635 = vadd.f32 %v1622, %v1634
    %v1636 = vpop.f32.mrf.mxu0
    %1637 = vdwg.mxu0
    %1638 = vmatpush.bf16.msra.mxu0 %v1128
    %1639 = vmatpush.bf16.msra.mxu0 %v1124
    %1640 = vmatpush.bf16.msra.mxu0 %v1120
    %1641 = vmatpush.bf16.msra.mxu0 %v1116
    %1642 = vmatpush.bf16.msra.mxu0 %v1112
    %1643 = vmatpush.bf16.msra.mxu0 %v1108
    %1644 = vmatpush.bf16.msra.mxu0 %v1104
    %1645 = vmatpush.bf16.msra.mxu0 %v1100
    %1646 = vmatmul.bf16.gmra.mxu0 %v132
    %v1647 = vpop.f32.mrf.mxu0
    %v1648 = vadd.f32 0.0, %v1647
    %v1649 = vpop.f32.mrf.mxu0
    %1650 = vdwg.mxu0
    %1651 = vmatpush.bf16.msra.mxu0 %v1160
    %1652 = vmatpush.bf16.msra.mxu0 %v1156
    %1653 = vmatpush.bf16.msra.mxu0 %v1152
    %1654 = vmatpush.bf16.msra.mxu0 %v1148
    %1655 = vmatpush.bf16.msra.mxu0 %v1144
    %1656 = vmatpush.bf16.msra.mxu0 %v1140
    %1657 = vmatpush.bf16.msra.mxu0 %v1136
    %1658 = vmatpush.bf16.msra.mxu0 %v1132
    %1659 = vmatmul.bf16.gmra.mxu0 %v133
    %v1660 = vpop.f32.mrf.mxu0
    %v1661 = vadd.f32 %v1648, %v1660
    %v1662 = vpop.f32.mrf.mxu0
    %1663 = vdwg.mxu0
    %1664 = vmatpush.bf16.msra.mxu0 %v1192
    %1665 = vmatpush.bf16.msra.mxu0 %v1188
    %1666 = vmatpush.bf16.msra.mxu0 %v1184
    %1667 = vmatpush.bf16.msra.mxu0 %v1180
    %1668 = vmatpush.bf16.msra.mxu0 %v1176
    %1669 = vmatpush.bf16.msra.mxu0 %v1172
    %1670 = vmatpush.bf16.msra.mxu0 %v1168
    %1671 = vmatpush.bf16.msra.mxu0 %v1164
    %1672 = vmatmul.bf16.gmra.mxu0 %v134
    %v1673 = vpop.f32.mrf.mxu0
    %v1674 = vadd.f32 %v1661, %v1673
    %v1675 = vpop.f32.mrf.mxu0
    %1676 = vdwg.mxu0
    %1677 = vmatpush.bf16.msra.mxu0 %v1224
    %1678 = vmatpush.bf16.msra.mxu0 %v1220
    %1679 = vmatpush.bf16.msra.mxu0 %v1216
    %1680 = vmatpush.bf16.msra.mxu0 %v1212
    %1681 = vmatpush.bf16.msra.mxu0 %v1208
    %1682 = vmatpush.bf16.msra.mxu0 %v1204
    %1683 = vmatpush.bf16.msra.mxu0 %v1200
    %1684 = vmatpush.bf16.msra.mxu0 %v1196
    %1685 = vmatmul.bf16.gmra.mxu0 %v135
    %v1686 = vpop.f32.mrf.mxu0
    %v1687 = vadd.f32 %v1674, %v1686
    %v1688 = vpop.f32.mrf.mxu0
    %1689 = vdwg.mxu0
    %1690 = vmatpush.bf16.msra.mxu0 %v1256
    %1691 = vmatpush.bf16.msra.mxu0 %v1252
    %1692 = vmatpush.bf16.msra.mxu0 %v1248
    %1693 = vmatpush.bf16.msra.mxu0 %v1244
    %1694 = vmatpush.bf16.msra.mxu0 %v1240
    %1695 = vmatpush.bf16.msra.mxu0 %v1236
    %1696 = vmatpush.bf16.msra.mxu0 %v1232
    %1697 = vmatpush.bf16.msra.mxu0 %v1228
    %1698 = vmatmul.bf16.gmra.mxu0 %v136
    %v1699 = vpop.f32.mrf.mxu0
    %v1700 = vadd.f32 %v1687, %v1699
    %v1701 = vpop.f32.mrf.mxu0
    %1702 = vdwg.mxu0
    %1703 = vmatpush.bf16.msra.mxu0 %v1288
    %1704 = vmatpush.bf16.msra.mxu0 %v1284
    %1705 = vmatpush.bf16.msra.mxu0 %v1280
    %1706 = vmatpush.bf16.msra.mxu0 %v1276
    %1707 = vmatpush.bf16.msra.mxu0 %v1272
    %1708 = vmatpush.bf16.msra.mxu0 %v1268
    %1709 = vmatpush.bf16.msra.mxu0 %v1264
    %1710 = vmatpush.bf16.msra.mxu0 %v1260
    %1711 = vmatmul.bf16.gmra.mxu0 %v137
    %v1712 = vpop.f32.mrf.mxu0
    %v1713 = vadd.f32 %v1700, %v1712
    %v1714 = vpop.f32.mrf.mxu0
    %1715 = vdwg.mxu0
    %1716 = vmatpush.bf16.msra.mxu0 %v1129
    %1717 = vmatpush.bf16.msra.mxu0 %v1125
    %1718 = vmatpush.bf16.msra.mxu0 %v1121
    %1719 = vmatpush.bf16.msra.mxu0 %v1117
    %1720 = vmatpush.bf16.msra.mxu0 %v1113
    %1721 = vmatpush.bf16.msra.mxu0 %v1109
    %1722 = vmatpush.bf16.msra.mxu0 %v1105
    %1723 = vmatpush.bf16.msra.mxu0 %v1101
    %1724 = vmatmul.bf16.gmra.mxu0 %v132
    %v1725 = vpop.f32.mrf.mxu0
    %v1726 = vadd.f32 0.0, %v1725
    %v1727 = vpop.f32.mrf.mxu0
    %1728 = vdwg.mxu0
    %1729 = vmatpush.bf16.msra.mxu0 %v1161
    %1730 = vmatpush.bf16.msra.mxu0 %v1157
    %1731 = vmatpush.bf16.msra.mxu0 %v1153
    %1732 = vmatpush.bf16.msra.mxu0 %v1149
    %1733 = vmatpush.bf16.msra.mxu0 %v1145
    %1734 = vmatpush.bf16.msra.mxu0 %v1141
    %1735 = vmatpush.bf16.msra.mxu0 %v1137
    %1736 = vmatpush.bf16.msra.mxu0 %v1133
    %1737 = vmatmul.bf16.gmra.mxu0 %v133
    %v1738 = vpop.f32.mrf.mxu0
    %v1739 = vadd.f32 %v1726, %v1738
    %v1740 = vpop.f32.mrf.mxu0
    %1741 = vdwg.mxu0
    %1742 = vmatpush.bf16.msra.mxu0 %v1193
    %1743 = vmatpush.bf16.msra.mxu0 %v1189
    %1744 = vmatpush.bf16.msra.mxu0 %v1185
    %1745 = vmatpush.bf16.msra.mxu0 %v1181
    %1746 = vmatpush.bf16.msra.mxu0 %v1177
    %1747 = vmatpush.bf16.msra.mxu0 %v1173
    %1748 = vmatpush.bf16.msra.mxu0 %v1169
    %1749 = vmatpush.bf16.msra.mxu0 %v1165
    %1750 = vmatmul.bf16.gmra.mxu0 %v134
    %v1751 = vpop.f32.mrf.mxu0
    %v1752 = vadd.f32 %v1739, %v1751
    %v1753 = vpop.f32.mrf.mxu0
    %1754 = vdwg.mxu0
    %1755 = vmatpush.bf16.msra.mxu0 %v1225
    %1756 = vmatpush.bf16.msra.mxu0 %v1221
    %1757 = vmatpush.bf16.msra.mxu0 %v1217
    %1758 = vmatpush.bf16.msra.mxu0 %v1213
    %1759 = vmatpush.bf16.msra.mxu0 %v1209
    %1760 = vmatpush.bf16.msra.mxu0 %v1205
    %1761 = vmatpush.bf16.msra.mxu0 %v1201
    %1762 = vmatpush.bf16.msra.mxu0 %v1197
    %1763 = vmatmul.bf16.gmra.mxu0 %v135
    %v1764 = vpop.f32.mrf.mxu0
    %v1765 = vadd.f32 %v1752, %v1764
    %v1766 = vpop.f32.mrf.mxu0
    %1767 = vdwg.mxu0
    %1768 = vmatpush.bf16.msra.mxu0 %v1257
    %1769 = vmatpush.bf16.msra.mxu0 %v1253
    %1770 = vmatpush.bf16.msra.mxu0 %v1249
    %1771 = vmatpush.bf16.msra.mxu0 %v1245
    %1772 = vmatpush.bf16.msra.mxu0 %v1241
    %1773 = vmatpush.bf16.msra.mxu0 %v1237
    %1774 = vmatpush.bf16.msra.mxu0 %v1233
    %1775 = vmatpush.bf16.msra.mxu0 %v1229
    %1776 = vmatmul.bf16.gmra.mxu0 %v136
    %v1777 = vpop.f32.mrf.mxu0
    %v1778 = vadd.f32 %v1765, %v1777
    %v1779 = vpop.f32.mrf.mxu0
    %1780 = vdwg.mxu0
    %1781 = vmatpush.bf16.msra.mxu0 %v1289
    %1782 = vmatpush.bf16.msra.mxu0 %v1285
    %1783 = vmatpush.bf16.msra.mxu0 %v1281
    %1784 = vmatpush.bf16.msra.mxu0 %v1277
    %1785 = vmatpush.bf16.msra.mxu0 %v1273
    %1786 = vmatpush.bf16.msra.mxu0 %v1269
    %1787 = vmatpush.bf16.msra.mxu0 %v1265
    %1788 = vmatpush.bf16.msra.mxu0 %v1261
    %1789 = vmatmul.bf16.gmra.mxu0 %v137
    %v1790 = vpop.f32.mrf.mxu0
    %v1791 = vadd.f32 %v1778, %v1790
    %v1792 = vpop.f32.mrf.mxu0
    %1793 = vdwg.mxu0
    %v1986 = vunpack.c.l.b16 %v138
    %v1987 = vunpack.c.h.b16 %v138
    %v1988 = vunpack.c.l.b16 %v139
    %v1989 = vunpack.c.h.b16 %v139
    %v1990 = vunpack.c.l.b16 %v140
    %v1991 = vunpack.c.h.b16 %v140
    %v1992 = vunpack.c.l.b16 %v141
    %v1993 = vunpack.c.h.b16 %v141
    %v1994 = vunpack.c.l.b16 %v142
    %v1995 = vunpack.c.h.b16 %v142
    %v1996 = vunpack.c.l.b16 %v143
    %v1997 = vunpack.c.h.b16 %v143
    %v1998 = vunpack.c.l.b16 %v144
    %v1999 = vunpack.c.h.b16 %v144
    %v2000 = vunpack.c.l.b16 %v145
    %v2001 = vunpack.c.h.b16 %v145
    %v2002 = vunpack.c.l.b16 %v146
    %v2003 = vunpack.c.h.b16 %v146
    %v2004 = vunpack.c.l.b16 %v147
    %v2005 = vunpack.c.h.b16 %v147
    %v2006 = vunpack.c.l.b16 %v148
    %v2007 = vunpack.c.h.b16 %v148
    %v2008 = vunpack.c.l.b16 %v149
    %v2009 = vunpack.c.h.b16 %v149
    %v2010 = vunpack.c.l.b16 %v150
    %v2011 = vunpack.c.h.b16 %v150
    %v2012 = vunpack.c.l.b16 %v151
    %v2013 = vunpack.c.h.b16 %v151
    %v2014 = vunpack.c.l.b16 %v152
    %v2015 = vunpack.c.h.b16 %v152
    %v2016 = vunpack.c.l.b16 %v153
    %v2017 = vunpack.c.h.b16 %v153
    %v2018 = vunpack.c.l.b16 %v154
    %v2019 = vunpack.c.h.b16 %v154
    %v2020 = vunpack.c.l.b16 %v155
    %v2021 = vunpack.c.h.b16 %v155
    %v2022 = vunpack.c.l.b16 %v156
    %v2023 = vunpack.c.h.b16 %v156
    %v2024 = vunpack.c.l.b16 %v157
    %v2025 = vunpack.c.h.b16 %v157
    %v2026 = vunpack.c.l.b16 %v158
    %v2027 = vunpack.c.h.b16 %v158
    %v2028 = vunpack.c.l.b16 %v159
    %v2029 = vunpack.c.h.b16 %v159
    %v2030 = vunpack.c.l.b16 %v160
    %v2031 = vunpack.c.h.b16 %v160
    %v2032 = vunpack.c.l.b16 %v161
    %v2033 = vunpack.c.h.b16 %v161
    %v2034 = vunpack.c.l.b16 %v162
    %v2035 = vunpack.c.h.b16 %v162
    %v2036 = vunpack.c.l.b16 %v163
    %v2037 = vunpack.c.h.b16 %v163
    %v2038 = vunpack.c.l.b16 %v164
    %v2039 = vunpack.c.h.b16 %v164
    %v2040 = vunpack.c.l.b16 %v165
    %v2041 = vunpack.c.h.b16 %v165
    %v2042 = vunpack.c.l.b16 %v166
    %v2043 = vunpack.c.h.b16 %v166
    %v2044 = vunpack.c.l.b16 %v167
    %v2045 = vunpack.c.h.b16 %v167
    %v2046 = vunpack.c.l.b16 %v168
    %v2047 = vunpack.c.h.b16 %v168
    %v2048 = vunpack.c.l.b16 %v169
    %v2049 = vunpack.c.h.b16 %v169
    %v2050 = vunpack.c.l.b16 %v170
    %v2051 = vunpack.c.h.b16 %v170
    %v2052 = vunpack.c.l.b16 %v171
    %v2053 = vunpack.c.h.b16 %v171
    %v2054 = vunpack.c.l.b16 %v172
    %v2055 = vunpack.c.h.b16 %v172
    %v2056 = vunpack.c.l.b16 %v173
    %v2057 = vunpack.c.h.b16 %v173
    %v2058 = vunpack.c.l.b16 %v174
    %v2059 = vunpack.c.h.b16 %v174
    %v2060 = vunpack.c.l.b16 %v175
    %v2061 = vunpack.c.h.b16 %v175
    %v2062 = vunpack.c.l.b16 %v176
    %v2063 = vunpack.c.h.b16 %v176
    %v2064 = vunpack.c.l.b16 %v177
    %v2065 = vunpack.c.h.b16 %v177
    %v2066 = vunpack.c.l.b16 %v178
    %v2067 = vunpack.c.h.b16 %v178
    %v2068 = vunpack.c.l.b16 %v179
    %v2069 = vunpack.c.h.b16 %v179
    %v2070 = vunpack.c.l.b16 %v180
    %v2071 = vunpack.c.h.b16 %v180
    %v2072 = vunpack.c.l.b16 %v181
    %v2073 = vunpack.c.h.b16 %v181
    %v2074 = vunpack.c.l.b16 %v182
    %v2075 = vunpack.c.h.b16 %v182
    %v2076 = vunpack.c.l.b16 %v183
    %v2077 = vunpack.c.h.b16 %v183
    %v2078 = vunpack.c.l.b16 %v184
    %v2079 = vunpack.c.h.b16 %v184
    %v2080 = vunpack.c.l.b16 %v185
    %v2081 = vunpack.c.h.b16 %v185
    %v2082 = vunpack.c.l.b16 %v186
    %v2083 = vunpack.c.h.b16 %v186
    %v2084 = vunpack.c.l.b16 %v187
    %v2085 = vunpack.c.h.b16 %v187
    %v2086 = vunpack.c.l.b16 %v188
    %v2087 = vunpack.c.h.b16 %v188
    %v2088 = vunpack.c.l.b16 %v189
    %v2089 = vunpack.c.h.b16 %v189
    %v2090 = vunpack.c.l.b16 %v190
    %v2091 = vunpack.c.h.b16 %v190
    %v2092 = vunpack.c.l.b16 %v191
    %v2093 = vunpack.c.h.b16 %v191
    %v2094 = vunpack.c.l.b16 %v192
    %v2095 = vunpack.c.h.b16 %v192
    %v2096 = vunpack.c.l.b16 %v193
    %v2097 = vunpack.c.h.b16 %v193
    %v2098 = vunpack.c.l.b16 %v194
    %v2099 = vunpack.c.h.b16 %v194
    %v2100 = vunpack.c.l.b16 %v195
    %v2101 = vunpack.c.h.b16 %v195
    %v2102 = vunpack.c.l.b16 %v196
    %v2103 = vunpack.c.h.b16 %v196
    %v2104 = vunpack.c.l.b16 %v197
    %v2105 = vunpack.c.h.b16 %v197
    %v2106 = vunpack.c.l.b16 %v198
    %v2107 = vunpack.c.h.b16 %v198
    %v2108 = vunpack.c.l.b16 %v199
    %v2109 = vunpack.c.h.b16 %v199
    %v2110 = vunpack.c.l.b16 %v200
    %v2111 = vunpack.c.h.b16 %v200
    %v2112 = vunpack.c.l.b16 %v201
    %v2113 = vunpack.c.h.b16 %v201
    %v2114 = vunpack.c.l.b16 %v202
    %v2115 = vunpack.c.h.b16 %v202
    %v2116 = vunpack.c.l.b16 %v203
    %v2117 = vunpack.c.h.b16 %v203
    %v2118 = vunpack.c.l.b16 %v204
    %v2119 = vunpack.c.h.b16 %v204
    %v2120 = vunpack.c.l.b16 %v205
    %v2121 = vunpack.c.h.b16 %v205
    %v2122 = vunpack.c.l.b16 %v206
    %v2123 = vunpack.c.h.b16 %v206
    %v2124 = vunpack.c.l.b16 %v207
    %v2125 = vunpack.c.h.b16 %v207
    %v2126 = vunpack.c.l.b16 %v208
    %v2127 = vunpack.c.h.b16 %v208
    %v2128 = vunpack.c.l.b16 %v209
    %v2129 = vunpack.c.h.b16 %v209
    %v2130 = vunpack.c.l.b16 %v210
    %v2131 = vunpack.c.h.b16 %v210
    %v2132 = vunpack.c.l.b16 %v211
    %v2133 = vunpack.c.h.b16 %v211
    %v2134 = vunpack.c.l.b16 %v212
    %v2135 = vunpack.c.h.b16 %v212
    %v2136 = vunpack.c.l.b16 %v213
    %v2137 = vunpack.c.h.b16 %v213
    %v2138 = vunpack.c.l.b16 %v214
    %v2139 = vunpack.c.h.b16 %v214
    %v2140 = vunpack.c.l.b16 %v215
    %v2141 = vunpack.c.h.b16 %v215
    %v2142 = vunpack.c.l.b16 %v216
    %v2143 = vunpack.c.h.b16 %v216
    %v2144 = vunpack.c.l.b16 %v217
    %v2145 = vunpack.c.h.b16 %v217
    %v2146 = vunpack.c.l.b16 %v218
    %v2147 = vunpack.c.h.b16 %v218
    %v2148 = vunpack.c.l.b16 %v219
    %v2149 = vunpack.c.h.b16 %v219
    %v2150 = vunpack.c.l.b16 %v220
    %v2151 = vunpack.c.h.b16 %v220
    %v2152 = vunpack.c.l.b16 %v221
    %v2153 = vunpack.c.h.b16 %v221
    %v2154 = vunpack.c.l.b16 %v222
    %v2155 = vunpack.c.h.b16 %v222
    %v2156 = vunpack.c.l.b16 %v223
    %v2157 = vunpack.c.h.b16 %v223
    %v2158 = vunpack.c.l.b16 %v224
    %v2159 = vunpack.c.h.b16 %v224
    %v2160 = vunpack.c.l.b16 %v225
    %v2161 = vunpack.c.h.b16 %v225
    %v2162 = vunpack.c.l.b16 %v226
    %v2163 = vunpack.c.h.b16 %v226
    %v2164 = vunpack.c.l.b16 %v227
    %v2165 = vunpack.c.h.b16 %v227
    %v2166 = vunpack.c.l.b16 %v228
    %v2167 = vunpack.c.h.b16 %v228
    %v2168 = vunpack.c.l.b16 %v229
    %v2169 = vunpack.c.h.b16 %v229
    %v2170 = vunpack.c.l.b16 %v230
    %v2171 = vunpack.c.h.b16 %v230
    %v2172 = vunpack.c.l.b16 %v231
    %v2173 = vunpack.c.h.b16 %v231
    %v2174 = vunpack.c.l.b16 %v232
    %v2175 = vunpack.c.h.b16 %v232
    %v2176 = vunpack.c.l.b16 %v233
    %v2177 = vunpack.c.h.b16 %v233
    %v2178 = vunpack.c.l.b16 %v234
    %v2179 = vunpack.c.h.b16 %v234
    %v2180 = vunpack.c.l.b16 %v235
    %v2181 = vunpack.c.h.b16 %v235
    %v2182 = vunpack.c.l.b16 %v236
    %v2183 = vunpack.c.h.b16 %v236
    %v2184 = vunpack.c.l.b16 %v237
    %v2185 = vunpack.c.h.b16 %v237
    %v2186 = vunpack.c.l.b16 %v238
    %v2187 = vunpack.c.h.b16 %v238
    %v2188 = vunpack.c.l.b16 %v239
    %v2189 = vunpack.c.h.b16 %v239
    %v2190 = vunpack.c.l.b16 %v240
    %v2191 = vunpack.c.h.b16 %v240
    %v2192 = vunpack.c.l.b16 %v241
    %v2193 = vunpack.c.h.b16 %v241
    %v2194 = vunpack.c.l.b16 %v242
    %v2195 = vunpack.c.h.b16 %v242
    %v2196 = vunpack.c.l.b16 %v243
    %v2197 = vunpack.c.h.b16 %v243
    %v2198 = vunpack.c.l.b16 %v244
    %v2199 = vunpack.c.h.b16 %v244
    %v2200 = vunpack.c.l.b16 %v245
    %v2201 = vunpack.c.h.b16 %v245
    %v2202 = vunpack.c.l.b16 %v246
    %v2203 = vunpack.c.h.b16 %v246
    %v2204 = vunpack.c.l.b16 %v247
    %v2205 = vunpack.c.h.b16 %v247
    %v2206 = vunpack.c.l.b16 %v248
    %v2207 = vunpack.c.h.b16 %v248
    %v2208 = vunpack.c.l.b16 %v249
    %v2209 = vunpack.c.h.b16 %v249
    %v2210 = vunpack.c.l.b16 %v250
    %v2211 = vunpack.c.h.b16 %v250
    %v2212 = vunpack.c.l.b16 %v251
    %v2213 = vunpack.c.h.b16 %v251
    %v2214 = vunpack.c.l.b16 %v252
    %v2215 = vunpack.c.h.b16 %v252
    %v2216 = vunpack.c.l.b16 %v253
    %v2217 = vunpack.c.h.b16 %v253
    %v2218 = vunpack.c.l.b16 %v254
    %v2219 = vunpack.c.h.b16 %v254
    %v2220 = vunpack.c.l.b16 %v255
    %v2221 = vunpack.c.h.b16 %v255
    %v2222 = vunpack.c.l.b16 %v256
    %v2223 = vunpack.c.h.b16 %v256
    %v2224 = vunpack.c.l.b16 %v257
    %v2225 = vunpack.c.h.b16 %v257
    %v2226 = vunpack.c.l.b16 %v258
    %v2227 = vunpack.c.h.b16 %v258
    %v2228 = vunpack.c.l.b16 %v259
    %v2229 = vunpack.c.h.b16 %v259
    %v2230 = vunpack.c.l.b16 %v260
    %v2231 = vunpack.c.h.b16 %v260
    %v2232 = vunpack.c.l.b16 %v261
    %v2233 = vunpack.c.h.b16 %v261
    %v2234 = vunpack.c.l.b16 %v262
    %v2235 = vunpack.c.h.b16 %v262
    %v2236 = vunpack.c.l.b16 %v263
    %v2237 = vunpack.c.h.b16 %v263
    %v2238 = vunpack.c.l.b16 %v264
    %v2239 = vunpack.c.h.b16 %v264
    %v2240 = vunpack.c.l.b16 %v265
    %v2241 = vunpack.c.h.b16 %v265
    %v2242 = vunpack.c.l.b16 %v266
    %v2243 = vunpack.c.h.b16 %v266
    %v2244 = vunpack.c.l.b16 %v267
    %v2245 = vunpack.c.h.b16 %v267
    %v2246 = vunpack.c.l.b16 %v268
    %v2247 = vunpack.c.h.b16 %v268
    %v2248 = vunpack.c.l.b16 %v269
    %v2249 = vunpack.c.h.b16 %v269
    %v2250 = vunpack.c.l.b16 %v270
    %v2251 = vunpack.c.h.b16 %v270
    %v2252 = vunpack.c.l.b16 %v271
    %v2253 = vunpack.c.h.b16 %v271
    %v2254 = vunpack.c.l.b16 %v272
    %v2255 = vunpack.c.h.b16 %v272
    %v2256 = vunpack.c.l.b16 %v273
    %v2257 = vunpack.c.h.b16 %v273
    %v2258 = vunpack.c.l.b16 %v274
    %v2259 = vunpack.c.h.b16 %v274
    %v2260 = vunpack.c.l.b16 %v275
    %v2261 = vunpack.c.h.b16 %v275
    %v2262 = vunpack.c.l.b16 %v276
    %v2263 = vunpack.c.h.b16 %v276
    %v2264 = vunpack.c.l.b16 %v277
    %v2265 = vunpack.c.h.b16 %v277
    %v2266 = vunpack.c.l.b16 %v278
    %v2267 = vunpack.c.h.b16 %v278
    %v2268 = vunpack.c.l.b16 %v279
    %v2269 = vunpack.c.h.b16 %v279
    %v2270 = vunpack.c.l.b16 %v280
    %v2271 = vunpack.c.h.b16 %v280
    %v2272 = vunpack.c.l.b16 %v281
    %v2273 = vunpack.c.h.b16 %v281
    %v2274 = vunpack.c.l.b16 %v282
    %v2275 = vunpack.c.h.b16 %v282
    %v2276 = vunpack.c.l.b16 %v283
    %v2277 = vunpack.c.h.b16 %v283
    %v2278 = vunpack.c.l.b16 %v284
    %v2279 = vunpack.c.h.b16 %v284
    %v2280 = vunpack.c.l.b16 %v285
    %v2281 = vunpack.c.h.b16 %v285
    %v2282 = vunpack.c.l.b16 %v286
    %v2283 = vunpack.c.h.b16 %v286
    %v2284 = vunpack.c.l.b16 %v287
    %v2285 = vunpack.c.h.b16 %v287
    %v2286 = vunpack.c.l.b16 %v288
    %v2287 = vunpack.c.h.b16 %v288
    %v2288 = vunpack.c.l.b16 %v289
    %v2289 = vunpack.c.h.b16 %v289
    %v2290 = vunpack.c.l.b16 %v290
    %v2291 = vunpack.c.h.b16 %v290
    %v2292 = vunpack.c.l.b16 %v291
    %v2293 = vunpack.c.h.b16 %v291
    %v2294 = vunpack.c.l.b16 %v292
    %v2295 = vunpack.c.h.b16 %v292
    %v2296 = vunpack.c.l.b16 %v293
    %v2297 = vunpack.c.h.b16 %v293
    %v2298 = vunpack.c.l.b16 %v294
    %v2299 = vunpack.c.h.b16 %v294
    %v2300 = vunpack.c.l.b16 %v295
    %v2301 = vunpack.c.h.b16 %v295
    %v2302 = vunpack.c.l.b16 %v296
    %v2303 = vunpack.c.h.b16 %v296
    %v2304 = vunpack.c.l.b16 %v297
    %v2305 = vunpack.c.h.b16 %v297
    %v2306 = vunpack.c.l.b16 %v298
    %v2307 = vunpack.c.h.b16 %v298
    %v2308 = vunpack.c.l.b16 %v299
    %v2309 = vunpack.c.h.b16 %v299
    %v2310 = vunpack.c.l.b16 %v300
    %v2311 = vunpack.c.h.b16 %v300
    %v2312 = vunpack.c.l.b16 %v301
    %v2313 = vunpack.c.h.b16 %v301
    %v2314 = vunpack.c.l.b16 %v302
    %v2315 = vunpack.c.h.b16 %v302
    %v2316 = vunpack.c.l.b16 %v303
    %v2317 = vunpack.c.h.b16 %v303
    %v2318 = vunpack.c.l.b16 %v304
    %v2319 = vunpack.c.h.b16 %v304
    %v2320 = vunpack.c.l.b16 %v305
    %v2321 = vunpack.c.h.b16 %v305
    %v2322 = vunpack.c.l.b16 %v306
    %v2323 = vunpack.c.h.b16 %v306
    %v2324 = vunpack.c.l.b16 %v307
    %v2325 = vunpack.c.h.b16 %v307
    %v2326 = vunpack.c.l.b16 %v308
    %v2327 = vunpack.c.h.b16 %v308
    %v2328 = vunpack.c.l.b16 %v309
    %v2329 = vunpack.c.h.b16 %v309
    %v2330 = vunpack.c.l.b16 %v310
    %v2331 = vunpack.c.h.b16 %v310
    %v2332 = vunpack.c.l.b16 %v311
    %v2333 = vunpack.c.h.b16 %v311
    %v2334 = vunpack.c.l.b16 %v312
    %v2335 = vunpack.c.h.b16 %v312
    %v2336 = vunpack.c.l.b16 %v313
    %v2337 = vunpack.c.h.b16 %v313
    %v2338 = vunpack.c.l.b16 %v314
    %v2339 = vunpack.c.h.b16 %v314
    %v2340 = vunpack.c.l.b16 %v315
    %v2341 = vunpack.c.h.b16 %v315
    %v2342 = vunpack.c.l.b16 %v316
    %v2343 = vunpack.c.h.b16 %v316
    %v2344 = vunpack.c.l.b16 %v317
    %v2345 = vunpack.c.h.b16 %v317
    %v2346 = vunpack.c.l.b16 %v318
    %v2347 = vunpack.c.h.b16 %v318
    %v2348 = vunpack.c.l.b16 %v319
    %v2349 = vunpack.c.h.b16 %v319
    %v2350 = vunpack.c.l.b16 %v320
    %v2351 = vunpack.c.h.b16 %v320
    %v2352 = vunpack.c.l.b16 %v321
    %v2353 = vunpack.c.h.b16 %v321
    %v2354 = vunpack.c.l.b16 %v322
    %v2355 = vunpack.c.h.b16 %v322
    %v2356 = vunpack.c.l.b16 %v323
    %v2357 = vunpack.c.h.b16 %v323
    %v2358 = vunpack.c.l.b16 %v324
    %v2359 = vunpack.c.h.b16 %v324
    %v2360 = vunpack.c.l.b16 %v325
    %v2361 = vunpack.c.h.b16 %v325
    %v2362 = vunpack.c.l.b16 %v326
    %v2363 = vunpack.c.h.b16 %v326
    %v2364 = vunpack.c.l.b16 %v327
    %v2365 = vunpack.c.h.b16 %v327
    %v2366 = vunpack.c.l.b16 %v328
    %v2367 = vunpack.c.h.b16 %v328
    %v2368 = vunpack.c.l.b16 %v329
    %v2369 = vunpack.c.h.b16 %v329
    %v2370 = vpack.c.b16 %v1990, %v1986
    %v2371 = vpack.c.b16 %v1991, %v1987
    %v2372 = vpack.c.b16 %v1992, %v1988
    %v2373 = vpack.c.b16 %v1993, %v1989
    %v2374 = vpack.c.b16 %v1998, %v1994
    %v2375 = vpack.c.b16 %v1999, %v1995
    %v2376 = vpack.c.b16 %v2000, %v1996
    %v2377 = vpack.c.b16 %v2001, %v1997
    %v2378 = vpack.c.b16 %v2006, %v2002
    %v2379 = vpack.c.b16 %v2007, %v2003
    %v2380 = vpack.c.b16 %v2008, %v2004
    %v2381 = vpack.c.b16 %v2009, %v2005
    %v2382 = vpack.c.b16 %v2014, %v2010
    %v2383 = vpack.c.b16 %v2015, %v2011
    %v2384 = vpack.c.b16 %v2016, %v2012
    %v2385 = vpack.c.b16 %v2017, %v2013
    %v2386 = vpack.c.b16 %v2022, %v2018
    %v2387 = vpack.c.b16 %v2023, %v2019
    %v2388 = vpack.c.b16 %v2024, %v2020
    %v2389 = vpack.c.b16 %v2025, %v2021
    %v2390 = vpack.c.b16 %v2030, %v2026
    %v2391 = vpack.c.b16 %v2031, %v2027
    %v2392 = vpack.c.b16 %v2032, %v2028
    %v2393 = vpack.c.b16 %v2033, %v2029
    %v2394 = vpack.c.b16 %v2038, %v2034
    %v2395 = vpack.c.b16 %v2039, %v2035
    %v2396 = vpack.c.b16 %v2040, %v2036
    %v2397 = vpack.c.b16 %v2041, %v2037
    %v2398 = vpack.c.b16 %v2046, %v2042
    %v2399 = vpack.c.b16 %v2047, %v2043
    %v2400 = vpack.c.b16 %v2048, %v2044
    %v2401 = vpack.c.b16 %v2049, %v2045
    %v2402 = vpack.c.b16 %v2054, %v2050
    %v2403 = vpack.c.b16 %v2055, %v2051
    %v2404 = vpack.c.b16 %v2056, %v2052
    %v2405 = vpack.c.b16 %v2057, %v2053
    %v2406 = vpack.c.b16 %v2062, %v2058
    %v2407 = vpack.c.b16 %v2063, %v2059
    %v2408 = vpack.c.b16 %v2064, %v2060
    %v2409 = vpack.c.b16 %v2065, %v2061
    %v2410 = vpack.c.b16 %v2070, %v2066
    %v2411 = vpack.c.b16 %v2071, %v2067
    %v2412 = vpack.c.b16 %v2072, %v2068
    %v2413 = vpack.c.b16 %v2073, %v2069
    %v2414 = vpack.c.b16 %v2078, %v2074
    %v2415 = vpack.c.b16 %v2079, %v2075
    %v2416 = vpack.c.b16 %v2080, %v2076
    %v2417 = vpack.c.b16 %v2081, %v2077
    %v2418 = vpack.c.b16 %v2086, %v2082
    %v2419 = vpack.c.b16 %v2087, %v2083
    %v2420 = vpack.c.b16 %v2088, %v2084
    %v2421 = vpack.c.b16 %v2089, %v2085
    %v2422 = vpack.c.b16 %v2094, %v2090
    %v2423 = vpack.c.b16 %v2095, %v2091
    %v2424 = vpack.c.b16 %v2096, %v2092
    %v2425 = vpack.c.b16 %v2097, %v2093
    %v2426 = vpack.c.b16 %v2102, %v2098
    %v2427 = vpack.c.b16 %v2103, %v2099
    %v2428 = vpack.c.b16 %v2104, %v2100
    %v2429 = vpack.c.b16 %v2105, %v2101
    %v2430 = vpack.c.b16 %v2110, %v2106
    %v2431 = vpack.c.b16 %v2111, %v2107
    %v2432 = vpack.c.b16 %v2112, %v2108
    %v2433 = vpack.c.b16 %v2113, %v2109
    %v2434 = vpack.c.b16 %v2118, %v2114
    %v2435 = vpack.c.b16 %v2119, %v2115
    %v2436 = vpack.c.b16 %v2120, %v2116
    %v2437 = vpack.c.b16 %v2121, %v2117
    %v2438 = vpack.c.b16 %v2126, %v2122
    %v2439 = vpack.c.b16 %v2127, %v2123
    %v2440 = vpack.c.b16 %v2128, %v2124
    %v2441 = vpack.c.b16 %v2129, %v2125
    %v2442 = vpack.c.b16 %v2134, %v2130
    %v2443 = vpack.c.b16 %v2135, %v2131
    %v2444 = vpack.c.b16 %v2136, %v2132
    %v2445 = vpack.c.b16 %v2137, %v2133
    %v2446 = vpack.c.b16 %v2142, %v2138
    %v2447 = vpack.c.b16 %v2143, %v2139
    %v2448 = vpack.c.b16 %v2144, %v2140
    %v2449 = vpack.c.b16 %v2145, %v2141
    %v2450 = vpack.c.b16 %v2150, %v2146
    %v2451 = vpack.c.b16 %v2151, %v2147
    %v2452 = vpack.c.b16 %v2152, %v2148
    %v2453 = vpack.c.b16 %v2153, %v2149
    %v2454 = vpack.c.b16 %v2158, %v2154
    %v2455 = vpack.c.b16 %v2159, %v2155
    %v2456 = vpack.c.b16 %v2160, %v2156
    %v2457 = vpack.c.b16 %v2161, %v2157
    %v2458 = vpack.c.b16 %v2166, %v2162
    %v2459 = vpack.c.b16 %v2167, %v2163
    %v2460 = vpack.c.b16 %v2168, %v2164
    %v2461 = vpack.c.b16 %v2169, %v2165
    %v2462 = vpack.c.b16 %v2174, %v2170
    %v2463 = vpack.c.b16 %v2175, %v2171
    %v2464 = vpack.c.b16 %v2176, %v2172
    %v2465 = vpack.c.b16 %v2177, %v2173
    %v2466 = vpack.c.b16 %v2182, %v2178
    %v2467 = vpack.c.b16 %v2183, %v2179
    %v2468 = vpack.c.b16 %v2184, %v2180
    %v2469 = vpack.c.b16 %v2185, %v2181
    %v2470 = vpack.c.b16 %v2190, %v2186
    %v2471 = vpack.c.b16 %v2191, %v2187
    %v2472 = vpack.c.b16 %v2192, %v2188
    %v2473 = vpack.c.b16 %v2193, %v2189
    %v2474 = vpack.c.b16 %v2198, %v2194
    %v2475 = vpack.c.b16 %v2199, %v2195
    %v2476 = vpack.c.b16 %v2200, %v2196
    %v2477 = vpack.c.b16 %v2201, %v2197
    %v2478 = vpack.c.b16 %v2206, %v2202
    %v2479 = vpack.c.b16 %v2207, %v2203
    %v2480 = vpack.c.b16 %v2208, %v2204
    %v2481 = vpack.c.b16 %v2209, %v2205
    %v2482 = vpack.c.b16 %v2214, %v2210
    %v2483 = vpack.c.b16 %v2215, %v2211
    %v2484 = vpack.c.b16 %v2216, %v2212
    %v2485 = vpack.c.b16 %v2217, %v2213
    %v2486 = vpack.c.b16 %v2222, %v2218
    %v2487 = vpack.c.b16 %v2223, %v2219
    %v2488 = vpack.c.b16 %v2224, %v2220
    %v2489 = vpack.c.b16 %v2225, %v2221
    %v2490 = vpack.c.b16 %v2230, %v2226
    %v2491 = vpack.c.b16 %v2231, %v2227
    %v2492 = vpack.c.b16 %v2232, %v2228
    %v2493 = vpack.c.b16 %v2233, %v2229
    %v2494 = vpack.c.b16 %v2238, %v2234
    %v2495 = vpack.c.b16 %v2239, %v2235
    %v2496 = vpack.c.b16 %v2240, %v2236
    %v2497 = vpack.c.b16 %v2241, %v2237
    %v2498 = vpack.c.b16 %v2246, %v2242
    %v2499 = vpack.c.b16 %v2247, %v2243
    %v2500 = vpack.c.b16 %v2248, %v2244
    %v2501 = vpack.c.b16 %v2249, %v2245
    %v2502 = vpack.c.b16 %v2254, %v2250
    %v2503 = vpack.c.b16 %v2255, %v2251
    %v2504 = vpack.c.b16 %v2256, %v2252
    %v2505 = vpack.c.b16 %v2257, %v2253
    %v2506 = vpack.c.b16 %v2262, %v2258
    %v2507 = vpack.c.b16 %v2263, %v2259
    %v2508 = vpack.c.b16 %v2264, %v2260
    %v2509 = vpack.c.b16 %v2265, %v2261
    %v2510 = vpack.c.b16 %v2270, %v2266
    %v2511 = vpack.c.b16 %v2271, %v2267
    %v2512 = vpack.c.b16 %v2272, %v2268
    %v2513 = vpack.c.b16 %v2273, %v2269
    %v2514 = vpack.c.b16 %v2278, %v2274
    %v2515 = vpack.c.b16 %v2279, %v2275
    %v2516 = vpack.c.b16 %v2280, %v2276
    %v2517 = vpack.c.b16 %v2281, %v2277
    %v2518 = vpack.c.b16 %v2286, %v2282
    %v2519 = vpack.c.b16 %v2287, %v2283
    %v2520 = vpack.c.b16 %v2288, %v2284
    %v2521 = vpack.c.b16 %v2289, %v2285
    %v2522 = vpack.c.b16 %v2294, %v2290
    %v2523 = vpack.c.b16 %v2295, %v2291
    %v2524 = vpack.c.b16 %v2296, %v2292
    %v2525 = vpack.c.b16 %v2297, %v2293
    %v2526 = vpack.c.b16 %v2302, %v2298
    %v2527 = vpack.c.b16 %v2303, %v2299
    %v2528 = vpack.c.b16 %v2304, %v2300
    %v2529 = vpack.c.b16 %v2305, %v2301
    %v2530 = vpack.c.b16 %v2310, %v2306
    %v2531 = vpack.c.b16 %v2311, %v2307
    %v2532 = vpack.c.b16 %v2312, %v2308
    %v2533 = vpack.c.b16 %v2313, %v2309
    %v2534 = vpack.c.b16 %v2318, %v2314
    %v2535 = vpack.c.b16 %v2319, %v2315
    %v2536 = vpack.c.b16 %v2320, %v2316
    %v2537 = vpack.c.b16 %v2321, %v2317
    %v2538 = vpack.c.b16 %v2326, %v2322
    %v2539 = vpack.c.b16 %v2327, %v2323
    %v2540 = vpack.c.b16 %v2328, %v2324
    %v2541 = vpack.c.b16 %v2329, %v2325
    %v2542 = vpack.c.b16 %v2334, %v2330
    %v2543 = vpack.c.b16 %v2335, %v2331
    %v2544 = vpack.c.b16 %v2336, %v2332
    %v2545 = vpack.c.b16 %v2337, %v2333
    %v2546 = vpack.c.b16 %v2342, %v2338
    %v2547 = vpack.c.b16 %v2343, %v2339
    %v2548 = vpack.c.b16 %v2344, %v2340
    %v2549 = vpack.c.b16 %v2345, %v2341
    %v2550 = vpack.c.b16 %v2350, %v2346
    %v2551 = vpack.c.b16 %v2351, %v2347
    %v2552 = vpack.c.b16 %v2352, %v2348
    %v2553 = vpack.c.b16 %v2353, %v2349
    %v2554 = vpack.c.b16 %v2358, %v2354
    %v2555 = vpack.c.b16 %v2359, %v2355
    %v2556 = vpack.c.b16 %v2360, %v2356
    %v2557 = vpack.c.b16 %v2361, %v2357
    %v2558 = vpack.c.b16 %v2366, %v2362
    %v2559 = vpack.c.b16 %v2367, %v2363
    %v2560 = vpack.c.b16 %v2368, %v2364
    %v2561 = vpack.c.b16 %v2369, %v2365
    %2754 = vmatpush.bf16.msra.mxu0 %v2398
    %2755 = vmatpush.bf16.msra.mxu0 %v2394
    %2756 = vmatpush.bf16.msra.mxu0 %v2390
    %2757 = vmatpush.bf16.msra.mxu0 %v2386
    %2758 = vmatpush.bf16.msra.mxu0 %v2382
    %2759 = vmatpush.bf16.msra.mxu0 %v2378
    %2760 = vmatpush.bf16.msra.mxu0 %v2374
    %2761 = vmatpush.bf16.msra.mxu0 %v2370
    %2762 = vmatmul.bf16.gmra.mxu0 %v120
    %v2763 = vpop.f32.mrf.mxu0
    %v2764 = vadd.f32 %v1557, %v2763
    %v2765 = vpop.f32.mrf.mxu0
    %2766 = vdwg.mxu0
    %2767 = vmatpush.bf16.msra.mxu0 %v2430
    %2768 = vmatpush.bf16.msra.mxu0 %v2426
    %2769 = vmatpush.bf16.msra.mxu0 %v2422
    %2770 = vmatpush.bf16.msra.mxu0 %v2418
    %2771 = vmatpush.bf16.msra.mxu0 %v2414
    %2772 = vmatpush.bf16.msra.mxu0 %v2410
    %2773 = vmatpush.bf16.msra.mxu0 %v2406
    %2774 = vmatpush.bf16.msra.mxu0 %v2402
    %2775 = vmatmul.bf16.gmra.mxu0 %v121
    %v2776 = vpop.f32.mrf.mxu0
    %v2777 = vadd.f32 %v2764, %v2776
    %v2778 = vpop.f32.mrf.mxu0
    %2779 = vdwg.mxu0
    %2780 = vmatpush.bf16.msra.mxu0 %v2462
    %2781 = vmatpush.bf16.msra.mxu0 %v2458
    %2782 = vmatpush.bf16.msra.mxu0 %v2454
    %2783 = vmatpush.bf16.msra.mxu0 %v2450
    %2784 = vmatpush.bf16.msra.mxu0 %v2446
    %2785 = vmatpush.bf16.msra.mxu0 %v2442
    %2786 = vmatpush.bf16.msra.mxu0 %v2438
    %2787 = vmatpush.bf16.msra.mxu0 %v2434
    %2788 = vmatmul.bf16.gmra.mxu0 %v122
    %v2789 = vpop.f32.mrf.mxu0
    %v2790 = vadd.f32 %v2777, %v2789
    %v2791 = vpop.f32.mrf.mxu0
    %2792 = vdwg.mxu0
    %2793 = vmatpush.bf16.msra.mxu0 %v2494
    %2794 = vmatpush.bf16.msra.mxu0 %v2490
    %2795 = vmatpush.bf16.msra.mxu0 %v2486
    %2796 = vmatpush.bf16.msra.mxu0 %v2482
    %2797 = vmatpush.bf16.msra.mxu0 %v2478
    %2798 = vmatpush.bf16.msra.mxu0 %v2474
    %2799 = vmatpush.bf16.msra.mxu0 %v2470
    %2800 = vmatpush.bf16.msra.mxu0 %v2466
    %2801 = vmatmul.bf16.gmra.mxu0 %v123
    %v2802 = vpop.f32.mrf.mxu0
    %v2803 = vadd.f32 %v2790, %v2802
    %v2804 = vpop.f32.mrf.mxu0
    %2805 = vdwg.mxu0
    %2806 = vmatpush.bf16.msra.mxu0 %v2526
    %2807 = vmatpush.bf16.msra.mxu0 %v2522
    %2808 = vmatpush.bf16.msra.mxu0 %v2518
    %2809 = vmatpush.bf16.msra.mxu0 %v2514
    %2810 = vmatpush.bf16.msra.mxu0 %v2510
    %2811 = vmatpush.bf16.msra.mxu0 %v2506
    %2812 = vmatpush.bf16.msra.mxu0 %v2502
    %2813 = vmatpush.bf16.msra.mxu0 %v2498
    %2814 = vmatmul.bf16.gmra.mxu0 %v124
    %v2815 = vpop.f32.mrf.mxu0
    %v2816 = vadd.f32 %v2803, %v2815
    %v2817 = vpop.f32.mrf.mxu0
    %2818 = vdwg.mxu0
    %2819 = vmatpush.bf16.msra.mxu0 %v2558
    %2820 = vmatpush.bf16.msra.mxu0 %v2554
    %2821 = vmatpush.bf16.msra.mxu0 %v2550
    %2822 = vmatpush.bf16.msra.mxu0 %v2546
    %2823 = vmatpush.bf16.msra.mxu0 %v2542
    %2824 = vmatpush.bf16.msra.mxu0 %v2538
    %2825 = vmatpush.bf16.msra.mxu0 %v2534
    %2826 = vmatpush.bf16.msra.mxu0 %v2530
    %2827 = vmatmul.bf16.gmra.mxu0 %v125
    %v2828 = vpop.f32.mrf.mxu0
    %v2829 = vadd.f32 %v2816, %v2828
    %v2830 = vpop.f32.mrf.mxu0
    %2831 = vdwg.mxu0
    %2832 = vmatpush.bf16.msra.mxu0 %v2399
    %2833 = vmatpush.bf16.msra.mxu0 %v2395
    %2834 = vmatpush.bf16.msra.mxu0 %v2391
    %2835 = vmatpush.bf16.msra.mxu0 %v2387
    %2836 = vmatpush.bf16.msra.mxu0 %v2383
    %2837 = vmatpush.bf16.msra.mxu0 %v2379
    %2838 = vmatpush.bf16.msra.mxu0 %v2375
    %2839 = vmatpush.bf16.msra.mxu0 %v2371
    %2840 = vmatmul.bf16.gmra.mxu0 %v120
    %v2841 = vpop.f32.mrf.mxu0
    %v2842 = vadd.f32 %v1635, %v2841
    %v2843 = vpop.f32.mrf.mxu0
    %2844 = vdwg.mxu0
    %2845 = vmatpush.bf16.msra.mxu0 %v2431
    %2846 = vmatpush.bf16.msra.mxu0 %v2427
    %2847 = vmatpush.bf16.msra.mxu0 %v2423
    %2848 = vmatpush.bf16.msra.mxu0 %v2419
    %2849 = vmatpush.bf16.msra.mxu0 %v2415
    %2850 = vmatpush.bf16.msra.mxu0 %v2411
    %2851 = vmatpush.bf16.msra.mxu0 %v2407
    %2852 = vmatpush.bf16.msra.mxu0 %v2403
    %2853 = vmatmul.bf16.gmra.mxu0 %v121
    %v2854 = vpop.f32.mrf.mxu0
    %v2855 = vadd.f32 %v2842, %v2854
    %v2856 = vpop.f32.mrf.mxu0
    %2857 = vdwg.mxu0
    %2858 = vmatpush.bf16.msra.mxu0 %v2463
    %2859 = vmatpush.bf16.msra.mxu0 %v2459
    %2860 = vmatpush.bf16.msra.mxu0 %v2455
    %2861 = vmatpush.bf16.msra.mxu0 %v2451
    %2862 = vmatpush.bf16.msra.mxu0 %v2447
    %2863 = vmatpush.bf16.msra.mxu0 %v2443
    %2864 = vmatpush.bf16.msra.mxu0 %v2439
    %2865 = vmatpush.bf16.msra.mxu0 %v2435
    %2866 = vmatmul.bf16.gmra.mxu0 %v122
    %v2867 = vpop.f32.mrf.mxu0
    %v2868 = vadd.f32 %v2855, %v2867
    %v2869 = vpop.f32.mrf.mxu0
    %2870 = vdwg.mxu0
    %2871 = vmatpush.bf16.msra.mxu0 %v2495
    %2872 = vmatpush.bf16.msra.mxu0 %v2491
    %2873 = vmatpush.bf16.msra.mxu0 %v2487
    %2874 = vmatpush.bf16.msra.mxu0 %v2483
    %2875 = vmatpush.bf16.msra.mxu0 %v2479
    %2876 = vmatpush.bf16.msra.mxu0 %v2475
    %2877 = vmatpush.bf16.msra.mxu0 %v2471
    %2878 = vmatpush.bf16.msra.mxu0 %v2467
    %2879 = vmatmul.bf16.gmra.mxu0 %v123
    %v2880 = vpop.f32.mrf.mxu0
    %v2881 = vadd.f32 %v2868, %v2880
    %v2882 = vpop.f32.mrf.mxu0
    %2883 = vdwg.mxu0
    %2884 = vmatpush.bf16.msra.mxu0 %v2527
    %2885 = vmatpush.bf16.msra.mxu0 %v2523
    %2886 = vmatpush.bf16.msra.mxu0 %v2519
    %2887 = vmatpush.bf16.msra.mxu0 %v2515
    %2888 = vmatpush.bf16.msra.mxu0 %v2511
    %2889 = vmatpush.bf16.msra.mxu0 %v2507
    %2890 = vmatpush.bf16.msra.mxu0 %v2503
    %2891 = vmatpush.bf16.msra.mxu0 %v2499
    %2892 = vmatmul.bf16.gmra.mxu0 %v124
    %v2893 = vpop.f32.mrf.mxu0
    %v2894 = vadd.f32 %v2881, %v2893
    %v2895 = vpop.f32.mrf.mxu0
    %2896 = vdwg.mxu0
    %2897 = vmatpush.bf16.msra.mxu0 %v2559
    %2898 = vmatpush.bf16.msra.mxu0 %v2555
    %2899 = vmatpush.bf16.msra.mxu0 %v2551
    %2900 = vmatpush.bf16.msra.mxu0 %v2547
    %2901 = vmatpush.bf16.msra.mxu0 %v2543
    %2902 = vmatpush.bf16.msra.mxu0 %v2539
    %2903 = vmatpush.bf16.msra.mxu0 %v2535
    %2904 = vmatpush.bf16.msra.mxu0 %v2531
    %2905 = vmatmul.bf16.gmra.mxu0 %v125
    %v2906 = vpop.f32.mrf.mxu0
    %v2907 = vadd.f32 %v2894, %v2906
    %v2908 = vpop.f32.mrf.mxu0
    %2909 = vdwg.mxu0
    %2910 = vmatpush.bf16.msra.mxu0 %v2400
    %2911 = vmatpush.bf16.msra.mxu0 %v2396
    %2912 = vmatpush.bf16.msra.mxu0 %v2392
    %2913 = vmatpush.bf16.msra.mxu0 %v2388
    %2914 = vmatpush.bf16.msra.mxu0 %v2384
    %2915 = vmatpush.bf16.msra.mxu0 %v2380
    %2916 = vmatpush.bf16.msra.mxu0 %v2376
    %2917 = vmatpush.bf16.msra.mxu0 %v2372
    %2918 = vmatmul.bf16.gmra.mxu0 %v120
    %v2919 = vpop.f32.mrf.mxu0
    %v2920 = vadd.f32 %v1713, %v2919
    %v2921 = vpop.f32.mrf.mxu0
    %2922 = vdwg.mxu0
    %2923 = vmatpush.bf16.msra.mxu0 %v2432
    %2924 = vmatpush.bf16.msra.mxu0 %v2428
    %2925 = vmatpush.bf16.msra.mxu0 %v2424
    %2926 = vmatpush.bf16.msra.mxu0 %v2420
    %2927 = vmatpush.bf16.msra.mxu0 %v2416
    %2928 = vmatpush.bf16.msra.mxu0 %v2412
    %2929 = vmatpush.bf16.msra.mxu0 %v2408
    %2930 = vmatpush.bf16.msra.mxu0 %v2404
    %2931 = vmatmul.bf16.gmra.mxu0 %v121
    %v2932 = vpop.f32.mrf.mxu0
    %v2933 = vadd.f32 %v2920, %v2932
    %v2934 = vpop.f32.mrf.mxu0
    %2935 = vdwg.mxu0
    %2936 = vmatpush.bf16.msra.mxu0 %v2464
    %2937 = vmatpush.bf16.msra.mxu0 %v2460
    %2938 = vmatpush.bf16.msra.mxu0 %v2456
    %2939 = vmatpush.bf16.msra.mxu0 %v2452
    %2940 = vmatpush.bf16.msra.mxu0 %v2448
    %2941 = vmatpush.bf16.msra.mxu0 %v2444
    %2942 = vmatpush.bf16.msra.mxu0 %v2440
    %2943 = vmatpush.bf16.msra.mxu0 %v2436
    %2944 = vmatmul.bf16.gmra.mxu0 %v122
    %v2945 = vpop.f32.mrf.mxu0
    %v2946 = vadd.f32 %v2933, %v2945
    %v2947 = vpop.f32.mrf.mxu0
    %2948 = vdwg.mxu0
    %2949 = vmatpush.bf16.msra.mxu0 %v2496
    %2950 = vmatpush.bf16.msra.mxu0 %v2492
    %2951 = vmatpush.bf16.msra.mxu0 %v2488
    %2952 = vmatpush.bf16.msra.mxu0 %v2484
    %2953 = vmatpush.bf16.msra.mxu0 %v2480
    %2954 = vmatpush.bf16.msra.mxu0 %v2476
    %2955 = vmatpush.bf16.msra.mxu0 %v2472
    %2956 = vmatpush.bf16.msra.mxu0 %v2468
    %2957 = vmatmul.bf16.gmra.mxu0 %v123
    %v2958 = vpop.f32.mrf.mxu0
    %v2959 = vadd.f32 %v2946, %v2958
    %v2960 = vpop.f32.mrf.mxu0
    %2961 = vdwg.mxu0
    %2962 = vmatpush.bf16.msra.mxu0 %v2528
    %2963 = vmatpush.bf16.msra.mxu0 %v2524
    %2964 = vmatpush.bf16.msra.mxu0 %v2520
    %2965 = vmatpush.bf16.msra.mxu0 %v2516
    %2966 = vmatpush.bf16.msra.mxu0 %v2512
    %2967 = vmatpush.bf16.msra.mxu0 %v2508
    %2968 = vmatpush.bf16.msra.mxu0 %v2504
    %2969 = vmatpush.bf16.msra.mxu0 %v2500
    %2970 = vmatmul.bf16.gmra.mxu0 %v124
    %v2971 = vpop.f32.mrf.mxu0
    %v2972 = vadd.f32 %v2959, %v2971
    %v2973 = vpop.f32.mrf.mxu0
    %2974 = vdwg.mxu0
    %2975 = vmatpush.bf16.msra.mxu0 %v2560
    %2976 = vmatpush.bf16.msra.mxu0 %v2556
    %2977 = vmatpush.bf16.msra.mxu0 %v2552
    %2978 = vmatpush.bf16.msra.mxu0 %v2548
    %2979 = vmatpush.bf16.msra.mxu0 %v2544
    %2980 = vmatpush.bf16.msra.mxu0 %v2540
    %2981 = vmatpush.bf16.msra.mxu0 %v2536
    %2982 = vmatpush.bf16.msra.mxu0 %v2532
    %2983 = vmatmul.bf16.gmra.mxu0 %v125
    %v2984 = vpop.f32.mrf.mxu0
    %v2985 = vadd.f32 %v2972, %v2984
    %v2986 = vpop.f32.mrf.mxu0
    %2987 = vdwg.mxu0
    %2988 = vmatpush.bf16.msra.mxu0 %v2401
    %2989 = vmatpush.bf16.msra.mxu0 %v2397
    %2990 = vmatpush.bf16.msra.mxu0 %v2393
    %2991 = vmatpush.bf16.msra.mxu0 %v2389
    %2992 = vmatpush.bf16.msra.mxu0 %v2385
    %2993 = vmatpush.bf16.msra.mxu0 %v2381
    %2994 = vmatpush.bf16.msra.mxu0 %v2377
    %2995 = vmatpush.bf16.msra.mxu0 %v2373
    %2996 = vmatmul.bf16.gmra.mxu0 %v120
    %v2997 = vpop.f32.mrf.mxu0
    %v2998 = vadd.f32 %v1791, %v2997
    %v2999 = vpop.f32.mrf.mxu0
    %3000 = vdwg.mxu0
    %3001 = vmatpush.bf16.msra.mxu0 %v2433
    %3002 = vmatpush.bf16.msra.mxu0 %v2429
    %3003 = vmatpush.bf16.msra.mxu0 %v2425
    %3004 = vmatpush.bf16.msra.mxu0 %v2421
    %3005 = vmatpush.bf16.msra.mxu0 %v2417
    %3006 = vmatpush.bf16.msra.mxu0 %v2413
    %3007 = vmatpush.bf16.msra.mxu0 %v2409
    %3008 = vmatpush.bf16.msra.mxu0 %v2405
    %3009 = vmatmul.bf16.gmra.mxu0 %v121
    %v3010 = vpop.f32.mrf.mxu0
    %v3011 = vadd.f32 %v2998, %v3010
    %v3012 = vpop.f32.mrf.mxu0
    %3013 = vdwg.mxu0
    %3014 = vmatpush.bf16.msra.mxu0 %v2465
    %3015 = vmatpush.bf16.msra.mxu0 %v2461
    %3016 = vmatpush.bf16.msra.mxu0 %v2457
    %3017 = vmatpush.bf16.msra.mxu0 %v2453
    %3018 = vmatpush.bf16.msra.mxu0 %v2449
    %3019 = vmatpush.bf16.msra.mxu0 %v2445
    %3020 = vmatpush.bf16.msra.mxu0 %v2441
    %3021 = vmatpush.bf16.msra.mxu0 %v2437
    %3022 = vmatmul.bf16.gmra.mxu0 %v122
    %v3023 = vpop.f32.mrf.mxu0
    %v3024 = vadd.f32 %v3011, %v3023
    %v3025 = vpop.f32.mrf.mxu0
    %3026 = vdwg.mxu0
    %3027 = vmatpush.bf16.msra.mxu0 %v2497
    %3028 = vmatpush.bf16.msra.mxu0 %v2493
    %3029 = vmatpush.bf16.msra.mxu0 %v2489
    %3030 = vmatpush.bf16.msra.mxu0 %v2485
    %3031 = vmatpush.bf16.msra.mxu0 %v2481
    %3032 = vmatpush.bf16.msra.mxu0 %v2477
    %3033 = vmatpush.bf16.msra.mxu0 %v2473
    %3034 = vmatpush.bf16.msra.mxu0 %v2469
    %3035 = vmatmul.bf16.gmra.mxu0 %v123
    %v3036 = vpop.f32.mrf.mxu0
    %v3037 = vadd.f32 %v3024, %v3036
    %v3038 = vpop.f32.mrf.mxu0
    %3039 = vdwg.mxu0
    %3040 = vmatpush.bf16.msra.mxu0 %v2529
    %3041 = vmatpush.bf16.msra.mxu0 %v2525
    %3042 = vmatpush.bf16.msra.mxu0 %v2521
    %3043 = vmatpush.bf16.msra.mxu0 %v2517
    %3044 = vmatpush.bf16.msra.mxu0 %v2513
    %3045 = vmatpush.bf16.msra.mxu0 %v2509
    %3046 = vmatpush.bf16.msra.mxu0 %v2505
    %3047 = vmatpush.bf16.msra.mxu0 %v2501
    %3048 = vmatmul.bf16.gmra.mxu0 %v124
    %v3049 = vpop.f32.mrf.mxu0
    %v3050 = vadd.f32 %v3037, %v3049
    %v3051 = vpop.f32.mrf.mxu0
    %3052 = vdwg.mxu0
    %3053 = vmatpush.bf16.msra.mxu0 %v2561
    %3054 = vmatpush.bf16.msra.mxu0 %v2557
    %3055 = vmatpush.bf16.msra.mxu0 %v2553
    %3056 = vmatpush.bf16.msra.mxu0 %v2549
    %3057 = vmatpush.bf16.msra.mxu0 %v2545
    %3058 = vmatpush.bf16.msra.mxu0 %v2541
    %3059 = vmatpush.bf16.msra.mxu0 %v2537
    %3060 = vmatpush.bf16.msra.mxu0 %v2533
    %3061 = vmatmul.bf16.gmra.mxu0 %v125
    %v3062 = vpop.f32.mrf.mxu0
    %v3063 = vadd.f32 %v3050, %v3062
    %v3064 = vpop.f32.mrf.mxu0
    %3065 = vdwg.mxu0
    %v3066 = vld [vmem:[#allocation9] sm:$0xf]
    %v3068 = vperm.slane %v3066, 0
    %v3069 = vperm.slane %v3066, 1
    %v3070 = vperm.slane %v3066, 2
    %v3071 = vperm.slane %v3066, 3
    %v3076 = vadd.f32 %v2829, %v3068
    %v3077 = vadd.f32 %v2907, %v3069
    %v3078 = vadd.f32 %v2985, %v3070
    %v3079 = vadd.f32 %v3063, %v3071
    %v3080 = vmax.f32 %v3076, 0.0
    %v3081 = vmax.f32 %v3077, 0.0
    %v3082 = vmax.f32 %v3078, 0.0
    %v3083 = vmax.f32 %v3079, 0.0
    %v3084 = vpack.c.bf16 %v3080, %v3080
    %v3085 = vpack.c.bf16 %v3081, %v3081
    %v3086 = vpack.c.bf16 %v3082, %v3082
    %v3087 = vpack.c.bf16 %v3083, %v3083
    %v3088 = vld [vmem:[#allocation10] sm:$0xf]
    %v3089 = vld [vmem:[#allocation10 + $0x4] sm:$0xf]
    %v3090 = vld [vmem:[#allocation10 + $0x8] sm:$0xf]
    %v3091 = vld [vmem:[#allocation10 + $0xc] sm:$0xf]
    %v3092 = vld [vmem:[#allocation10 + $0x10] sm:$0xf]
    %v3093 = vld [vmem:[#allocation10 + $0x14] sm:$0xf]
    %v3094 = vld [vmem:[#allocation10 + $0x18] sm:$0xf]
    %v3095 = vld [vmem:[#allocation10 + $0x1c] sm:$0xf]
    %v3096 = vld [vmem:[#allocation10 + $0x20] sm:$0xf]
    %v3097 = vld [vmem:[#allocation10 + $0x24] sm:$0xf]
    %v3098 = vld [vmem:[#allocation10 + $0x28] sm:$0xf]
    %v3099 = vld [vmem:[#allocation10 + $0x2c] sm:$0xf]
    %v3100 = vld [vmem:[#allocation10 + $0x30] sm:$0xf]
    %v3101 = vld [vmem:[#allocation10 + $0x34] sm:$0xf]
    %v3102 = vld [vmem:[#allocation10 + $0x38] sm:$0xf]
    %v3103 = vld [vmem:[#allocation10 + $0x3c] sm:$0xf]
    %v3104 = vld [vmem:[#allocation10 + $0x40] sm:$0xf]
    %v3105 = vld [vmem:[#allocation10 + $0x44] sm:$0xf]
    %v3106 = vld [vmem:[#allocation10 + $0x48] sm:$0xf]
    %v3107 = vld [vmem:[#allocation10 + $0x4c] sm:$0xf]
    %v3108 = vld [vmem:[#allocation10 + $0x50] sm:$0xf]
    %v3109 = vld [vmem:[#allocation10 + $0x54] sm:$0xf]
    %v3110 = vld [vmem:[#allocation10 + $0x58] sm:$0xf]
    %v3111 = vld [vmem:[#allocation10 + $0x5c] sm:$0xf]
    %v3112 = vld [vmem:[#allocation10 + $0x60] sm:$0xf]
    %v3113 = vld [vmem:[#allocation10 + $0x64] sm:$0xf]
    %v3114 = vld [vmem:[#allocation10 + $0x68] sm:$0xf]
    %v3115 = vld [vmem:[#allocation10 + $0x6c] sm:$0xf]
    %v3116 = vld [vmem:[#allocation10 + $0x70] sm:$0xf]
    %v3117 = vld [vmem:[#allocation10 + $0x74] sm:$0xf]
    %v3118 = vld [vmem:[#allocation10 + $0x78] sm:$0xf]
    %v3119 = vld [vmem:[#allocation10 + $0x7c] sm:$0xf]
    %v3120 = vld [vmem:[#allocation10 + $0x80] sm:$0xf]
    %v3121 = vld [vmem:[#allocation10 + $0x84] sm:$0xf]
    %v3122 = vld [vmem:[#allocation10 + $0x88] sm:$0xf]
    %v3123 = vld [vmem:[#allocation10 + $0x8c] sm:$0xf]
    %v3124 = vld [vmem:[#allocation10 + $0x90] sm:$0xf]
    %v3125 = vld [vmem:[#allocation10 + $0x94] sm:$0xf]
    %v3126 = vld [vmem:[#allocation10 + $0x98] sm:$0xf]
    %v3127 = vld [vmem:[#allocation10 + $0x9c] sm:$0xf]
    %v3128 = vld [vmem:[#allocation10 + $0xa0] sm:$0xf]
    %v3129 = vld [vmem:[#allocation10 + $0xa4] sm:$0xf]
    %v3130 = vld [vmem:[#allocation10 + $0xa8] sm:$0xf]
    %v3131 = vld [vmem:[#allocation10 + $0xac] sm:$0xf]
    %v3132 = vld [vmem:[#allocation10 + $0xb0] sm:$0xf]
    %v3133 = vld [vmem:[#allocation10 + $0xb4] sm:$0xf]
    %v3134 = vld [vmem:[#allocation10 + $0xb8] sm:$0xf]
    %v3135 = vld [vmem:[#allocation10 + $0xbc] sm:$0xf]
    %v3136 = vld [vmem:[#allocation10 + $0xc0] sm:$0xf]
    %v3137 = vld [vmem:[#allocation10 + $0xc4] sm:$0xf]
    %v3138 = vld [vmem:[#allocation10 + $0xc8] sm:$0xf]
    %v3139 = vld [vmem:[#allocation10 + $0xcc] sm:$0xf]
    %v3140 = vld [vmem:[#allocation10 + $0xd0] sm:$0xf]
    %v3141 = vld [vmem:[#allocation10 + $0xd4] sm:$0xf]
    %v3142 = vld [vmem:[#allocation10 + $0xd8] sm:$0xf]
    %v3143 = vld [vmem:[#allocation10 + $0xdc] sm:$0xf]
    %v3144 = vld [vmem:[#allocation10 + $0xe0] sm:$0xf]
    %v3145 = vld [vmem:[#allocation10 + $0xe4] sm:$0xf]
    %v3146 = vld [vmem:[#allocation10 + $0xe8] sm:$0xf]
    %v3147 = vld [vmem:[#allocation10 + $0xec] sm:$0xf]
    %v3148 = vld [vmem:[#allocation10 + $0xf0] sm:$0xf]
    %v3149 = vld [vmem:[#allocation10 + $0xf4] sm:$0xf]
    %v3150 = vld [vmem:[#allocation10 + $0xf8] sm:$0xf]
    %v3151 = vld [vmem:[#allocation10 + $0xfc] sm:$0xf]
    %v3152 = vld [vmem:[%s6] sm:$0x1]
    %v3154 = vperm.slane %v3152, 0
    %v3220 = vunpack.c.l.b16 %v3088
    %v3221 = vunpack.c.l.b16 %v3089
    %v3222 = vunpack.c.l.b16 %v3090
    %v3223 = vunpack.c.l.b16 %v3091
    %v3224 = vunpack.c.l.b16 %v3092
    %v3225 = vunpack.c.l.b16 %v3093
    %v3226 = vunpack.c.l.b16 %v3094
    %v3227 = vunpack.c.l.b16 %v3095
    %v3228 = vunpack.c.l.b16 %v3096
    %v3229 = vunpack.c.l.b16 %v3097
    %v3230 = vunpack.c.l.b16 %v3098
    %v3231 = vunpack.c.l.b16 %v3099
    %v3232 = vunpack.c.l.b16 %v3100
    %v3233 = vunpack.c.l.b16 %v3101
    %v3234 = vunpack.c.l.b16 %v3102
    %v3235 = vunpack.c.l.b16 %v3103
    %v3236 = vunpack.c.l.b16 %v3104
    %v3237 = vunpack.c.l.b16 %v3105
    %v3238 = vunpack.c.l.b16 %v3106
    %v3239 = vunpack.c.l.b16 %v3107
    %v3240 = vunpack.c.l.b16 %v3108
    %v3241 = vunpack.c.l.b16 %v3109
    %v3242 = vunpack.c.l.b16 %v3110
    %v3243 = vunpack.c.l.b16 %v3111
    %v3244 = vunpack.c.l.b16 %v3112
    %v3245 = vunpack.c.l.b16 %v3113
    %v3246 = vunpack.c.l.b16 %v3114
    %v3247 = vunpack.c.l.b16 %v3115
    %v3248 = vunpack.c.l.b16 %v3116
    %v3249 = vunpack.c.l.b16 %v3117
    %v3250 = vunpack.c.l.b16 %v3118
    %v3251 = vunpack.c.l.b16 %v3119
    %v3252 = vunpack.c.l.b16 %v3120
    %v3253 = vunpack.c.l.b16 %v3121
    %v3254 = vunpack.c.l.b16 %v3122
    %v3255 = vunpack.c.l.b16 %v3123
    %v3256 = vunpack.c.l.b16 %v3124
    %v3257 = vunpack.c.l.b16 %v3125
    %v3258 = vunpack.c.l.b16 %v3126
    %v3259 = vunpack.c.l.b16 %v3127
    %v3260 = vunpack.c.l.b16 %v3128
    %v3261 = vunpack.c.l.b16 %v3129
    %v3262 = vunpack.c.l.b16 %v3130
    %v3263 = vunpack.c.l.b16 %v3131
    %v3264 = vunpack.c.l.b16 %v3132
    %v3265 = vunpack.c.l.b16 %v3133
    %v3266 = vunpack.c.l.b16 %v3134
    %v3267 = vunpack.c.l.b16 %v3135
    %v3268 = vunpack.c.l.b16 %v3136
    %v3269 = vunpack.c.l.b16 %v3137
    %v3270 = vunpack.c.l.b16 %v3138
    %v3271 = vunpack.c.l.b16 %v3139
    %v3272 = vunpack.c.l.b16 %v3140
    %v3273 = vunpack.c.l.b16 %v3141
    %v3274 = vunpack.c.l.b16 %v3142
    %v3275 = vunpack.c.l.b16 %v3143
    %v3276 = vunpack.c.l.b16 %v3144
    %v3277 = vunpack.c.l.b16 %v3145
    %v3278 = vunpack.c.l.b16 %v3146
    %v3279 = vunpack.c.l.b16 %v3147
    %v3280 = vunpack.c.l.b16 %v3148
    %v3281 = vunpack.c.l.b16 %v3149
    %v3282 = vunpack.c.l.b16 %v3150
    %v3283 = vunpack.c.l.b16 %v3151
    %v3284 = vpack.c.b16 %v3221, %v3220
    %v3285 = vpack.c.b16 %v3223, %v3222
    %v3286 = vpack.c.b16 %v3225, %v3224
    %v3287 = vpack.c.b16 %v3227, %v3226
    %v3288 = vpack.c.b16 %v3229, %v3228
    %v3289 = vpack.c.b16 %v3231, %v3230
    %v3290 = vpack.c.b16 %v3233, %v3232
    %v3291 = vpack.c.b16 %v3235, %v3234
    %v3292 = vpack.c.b16 %v3237, %v3236
    %v3293 = vpack.c.b16 %v3239, %v3238
    %v3294 = vpack.c.b16 %v3241, %v3240
    %v3295 = vpack.c.b16 %v3243, %v3242
    %v3296 = vpack.c.b16 %v3245, %v3244
    %v3297 = vpack.c.b16 %v3247, %v3246
    %v3298 = vpack.c.b16 %v3249, %v3248
    %v3299 = vpack.c.b16 %v3251, %v3250
    %v3300 = vpack.c.b16 %v3253, %v3252
    %v3301 = vpack.c.b16 %v3255, %v3254
    %v3302 = vpack.c.b16 %v3257, %v3256
    %v3303 = vpack.c.b16 %v3259, %v3258
    %v3304 = vpack.c.b16 %v3261, %v3260
    %v3305 = vpack.c.b16 %v3263, %v3262
    %v3306 = vpack.c.b16 %v3265, %v3264
    %v3307 = vpack.c.b16 %v3267, %v3266
    %v3308 = vpack.c.b16 %v3269, %v3268
    %v3309 = vpack.c.b16 %v3271, %v3270
    %v3310 = vpack.c.b16 %v3273, %v3272
    %v3311 = vpack.c.b16 %v3275, %v3274
    %v3312 = vpack.c.b16 %v3277, %v3276
    %v3313 = vpack.c.b16 %v3279, %v3278
    %v3314 = vpack.c.b16 %v3281, %v3280
    %v3315 = vpack.c.b16 %v3283, %v3282
    %3348 = vmatpush.bf16.msra.mxu0 %v3291
    %3349 = vmatpush.bf16.msra.mxu0 %v3290
    %3350 = vmatpush.bf16.msra.mxu0 %v3289
    %3351 = vmatpush.bf16.msra.mxu0 %v3288
    %3352 = vmatpush.bf16.msra.mxu0 %v3287
    %3353 = vmatpush.bf16.msra.mxu0 %v3286
    %3354 = vmatpush.bf16.msra.mxu0 %v3285
    %3355 = vmatpush.bf16.msra.mxu0 %v3284
    %3356 = vmatmul.bf16.gmra.mxu0 %v3084
    %v3357 = vpop.f32.mrf.mxu0
    %v3358 = vadd.f32 %v3154, %v3357
    %v3359 = vpop.f32.mrf.mxu0
    %3360 = vdwg.mxu0
    %3361 = vmatpush.bf16.msra.mxu0 %v3299
    %3362 = vmatpush.bf16.msra.mxu0 %v3298
    %3363 = vmatpush.bf16.msra.mxu0 %v3297
    %3364 = vmatpush.bf16.msra.mxu0 %v3296
    %3365 = vmatpush.bf16.msra.mxu0 %v3295
    %3366 = vmatpush.bf16.msra.mxu0 %v3294
    %3367 = vmatpush.bf16.msra.mxu0 %v3293
    %3368 = vmatpush.bf16.msra.mxu0 %v3292
    %3369 = vmatmul.bf16.gmra.mxu0 %v3085
    %v3370 = vpop.f32.mrf.mxu0
    %v3371 = vadd.f32 %v3358, %v3370
    %v3372 = vpop.f32.mrf.mxu0
    %3373 = vdwg.mxu0
    %3374 = vmatpush.bf16.msra.mxu0 %v3307
    %3375 = vmatpush.bf16.msra.mxu0 %v3306
    %3376 = vmatpush.bf16.msra.mxu0 %v3305
    %3377 = vmatpush.bf16.msra.mxu0 %v3304
    %3378 = vmatpush.bf16.msra.mxu0 %v3303
    %3379 = vmatpush.bf16.msra.mxu0 %v3302
    %3380 = vmatpush.bf16.msra.mxu0 %v3301
    %3381 = vmatpush.bf16.msra.mxu0 %v3300
    %3382 = vmatmul.bf16.gmra.mxu0 %v3086
    %v3383 = vpop.f32.mrf.mxu0
    %v3384 = vadd.f32 %v3371, %v3383
    %v3385 = vpop.f32.mrf.mxu0
    %3386 = vdwg.mxu0
    %3387 = vmatpush.bf16.msra.mxu0 %v3315
    %3388 = vmatpush.bf16.msra.mxu0 %v3314
    %3389 = vmatpush.bf16.msra.mxu0 %v3313
    %3390 = vmatpush.bf16.msra.mxu0 %v3312
    %3391 = vmatpush.bf16.msra.mxu0 %v3311
    %3392 = vmatpush.bf16.msra.mxu0 %v3310
    %3393 = vmatpush.bf16.msra.mxu0 %v3309
    %3394 = vmatpush.bf16.msra.mxu0 %v3308
    %3395 = vmatmul.bf16.gmra.mxu0 %v3087
    %v3396 = vpop.f32.mrf.mxu0
    %v3397 = vadd.f32 %v3384, %v3396
    %v3398 = vpop.f32.mrf.mxu0
    %3399 = vdwg.mxu0
    %v3400 = vpack.c.bf16 %v3397, %v3397
    %3401 = vst [vmem:[%s7] sm:$0xf] %v3400
    // Predicated region
    $region54: #{clip_classifier_forward.1} parent=1 // pred_check
      _
    $region55: #{clip_classifier_forward.1} parent=1 // pred_check_branch
      %3403 = sbr.rel (0) target = $region57
    $region56: #{clip_classifier_forward.1} parent=1 // pred_region
      _
    $region57: #{clip_classifier_forward.1} parent=1 // pred_fallthru
      _
    // Predicated region
    $region58: #{clip_classifier_forward.1} parent=1 // pred_check
      _
    $region59: #{clip_classifier_forward.1} parent=1 // pred_check_branch
      %3405 = sbr.rel (0) target = $region61
    $region60: #{clip_classifier_forward.1} parent=1 // pred_region
      _
    $region61: #{clip_classifier_forward.1} parent=1 // pred_fallthru
      _
    %3406 = vsyncpa [#allocation3], 1
    %3407 = vsyncpa [#allocation5], 1
    %3408 = vsyncpa [#allocation8], 1
    %3409 = vsyncpa [#allocation11], 1

</llo_original>
